<compile_context>
chip_gen: v6e
topology: v6e:2x2x1
jax: 0.10.0
libtpu: 0.0.40
codegen_flags: <defaults>
</compile_context>

<pallas_src>
import functools

import jax
import jax.numpy as jnp
from jax.experimental import pallas as pl
from jax.experimental.pallas import tpu as pltpu

SHADOW_DIM = 1
WIDTH = 128               # main MLP width (depth=3: Lin->ReLU->Lin->ReLU->Lin)
SWIDTH = 64               # shadow MLP width
K0_DIM = 6                # main-net input features (in_dim - shadow_dim)
IN_DIM = K0_DIM + SHADOW_DIM   # 7
OUT_DIM = 4
FUSED = WIDTH + SWIDTH    # 192 fused hidden width (<= 256: one MXU pass on v6e/v7x)


def _shadow_v4_kernel(x_ref,
                      w1t_ref, b1_ref, w2t_ref, b2_ref, w3t_ref, b3_ref,
                      o_ref):
    """One N-tile. x_ref: (IN_DIM, TN) f32, o_ref: (OUT_DIM, TN) f32.

    Weights are pre-fused block-diagonal and pre-transposed:
      w1t: (192, 7) bf16, w2t: (192, 192) bf16, w3t: (4, 192) bf16
      biases: (192, 1) / (192, 1) / (4, 1) f32 (broadcast over the lane axis).
    """
    x = x_ref[...].astype(jnp.bfloat16)                                  # (7, TN)

    h = jnp.dot(w1t_ref[...], x, preferred_element_type=jnp.float32)    # (192, TN)
    h = jnp.maximum(h + b1_ref[...], 0.0)

    h = jnp.dot(w2t_ref[...], h.astype(jnp.bfloat16),
                preferred_element_type=jnp.float32)                      # (192, TN)
    h = jnp.maximum(h + b2_ref[...], 0.0)

    o = jnp.dot(w3t_ref[...], h.astype(jnp.bfloat16),
                preferred_element_type=jnp.float32)                      # (4, TN)
    o_ref[...] = o + b3_ref[...]


def _fuse_params(params):
    """Pack (main, shadow) nets into block-diagonal, transposed, bf16 weights."""
    (w1, b1, w2, b2, w3, b3, sw1, sb1, sw2, sb2, sw3, sb3) = params

    w1f = jnp.zeros((IN_DIM, FUSED), jnp.float32)
    w1f = w1f.at[SHADOW_DIM:, :WIDTH].set(w1)        # rgb features -> cols 0:128
    w1f = w1f.at[:SHADOW_DIM, WIDTH:].set(sw1)       # shadow feature -> cols 128:192
    b1f = jnp.concatenate([b1, sb1], axis=-1)        # (1, 192)

    w2f = jnp.zeros((FUSED, FUSED), jnp.float32)
    w2f = w2f.at[:WIDTH, :WIDTH].set(w2)
    w2f = w2f.at[WIDTH:, WIDTH:].set(sw2)
    b2f = jnp.concatenate([b2, sb2], axis=-1)        # (1, 192)

    w3f = jnp.zeros((FUSED, OUT_DIM), jnp.float32)
    w3f = w3f.at[:WIDTH, :3].set(w3)                 # rgb -> out cols 0:3
    w3f = w3f.at[WIDTH:, 3:].set(sw3)                # shadow -> out col 3
    b3f = jnp.concatenate([b3, sb3], axis=-1)        # (1, 4)

    return (w1f.T.astype(jnp.bfloat16), b1f.T,       # (192, 7) bf16, (192, 1) f32
            w2f.T.astype(jnp.bfloat16), b2f.T,       # (192, 192),    (192, 1)
            w3f.T.astype(jnp.bfloat16), b3f.T)       # (4, 192),      (4, 1)


@functools.partial(jax.jit, static_argnames=("tn",))
def shadow_v4_mlp(x, params, tn=1024):
    """x: (N, IN_DIM) f32; params: raw per-layer weights; returns (N, OUT_DIM) f32."""
    N, D = x.shape
    assert D == IN_DIM

    # Lane-dense tile (multiple of 128); keep >= 2 grid steps when possible so
    # v7x's two TensorCores both get work via the "parallel" grid axis.
    tn_eff = min(tn, max(128, ((N + 1) // 2) // 128 * 128))
    n_tiles = pl.cdiv(N, tn_eff)
    n_pad = n_tiles * tn_eff

    fused = _fuse_params(params)

    # Feature-major layout: (IN_DIM, N) in, (OUT_DIM, N) out (lane-dense stores).
    xt = x.T
    if n_pad != N:
        xt = jnp.pad(xt, ((0, 0), (0, n_pad - N)))

    # Weights/biases: full-array blocks with a constant index_map -> resident in
    # VMEM across all grid steps (no per-step re-fetch).
    param_specs = [pl.BlockSpec(p.shape, lambda i: (0, 0)) for p in fused]

    out_t = pl.pallas_call(
        _shadow_v4_kernel,
        out_shape=jax.ShapeDtypeStruct((OUT_DIM, n_pad), jnp.float32),
        grid_spec=pltpu.PrefetchScalarGridSpec(
            num_scalar_prefetch=0,
            grid=(n_tiles,),
            in_specs=[pl.BlockSpec((IN_DIM, tn_eff), lambda i: (0, i))] + param_specs,
            out_specs=pl.BlockSpec((OUT_DIM, tn_eff), lambda i: (0, i)),
        ),
        compiler_params=pltpu.CompilerParams(
            dimension_semantics=("parallel",)),
    )(xt, *fused)

    return out_t[:, :N].T


def init_params(key):
    """Deterministic init mimicking nn.Linear default (uniform +-1/sqrt(fan_in)).
    Weights stored as (in_features, out_features) so the reference does x @ W.
    Last-layer biases are zero (nn.init.constant_(..., 0))."""
    ks = jax.random.split(key, 12)

    def lin(kw, kb, fan_in, fan_out, zero_bias=False):
        bound = 1.0 / jnp.sqrt(float(fan_in))
        w = jax.random.uniform(kw, (fan_in, fan_out), jnp.float32, -bound, bound)
        if zero_bias:
            b = jnp.zeros((1, fan_out), jnp.float32)
        else:
            b = jax.random.uniform(kb, (1, fan_out), jnp.float32, -bound, bound)
        return w, b

    w1, b1 = lin(ks[0], ks[1], K0_DIM, WIDTH)
    w2, b2 = lin(ks[2], ks[3], WIDTH, WIDTH)
    w3, b3 = lin(ks[4], ks[5], WIDTH, 3, zero_bias=True)
    sw1, sb1 = lin(ks[6], ks[7], SHADOW_DIM, SWIDTH)
    sw2, sb2 = lin(ks[8], ks[9], SWIDTH, SWIDTH)
    sw3, sb3 = lin(ks[10], ks[11], SWIDTH, 1, zero_bias=True)
    return (w1, b1, w2, b2, w3, b3, sw1, sb1, sw2, sb2, sw3, sb3)


def reference_forward(x, params):
    """Pure f32 reference matching the PyTorch module semantics."""
    (w1, b1, w2, b2, w3, b3, sw1, sb1, sw2, sb2, sw3, sb3) = params
    xr = x[..., SHADOW_DIM:]
    xs = x[..., :SHADOW_DIM]
    h = jnp.maximum(xr @ w1 + b1, 0.0)
    h = jnp.maximum(h @ w2 + b2, 0.0)
    rgb = h @ w3 + b3
    s = jnp.maximum(xs @ sw1 + sb1, 0.0)
    s = jnp.maximum(s @ sw2 + sb2, 0.0)
    shadow = s @ sw3 + sb3
    return jnp.concatenate([rgb, shadow], axis=-1)


if __name__ == "__main__":
    key = jax.random.PRNGKey(0)
    k_x, k_p = jax.random.split(key)

    N = 1024  # sample points; tile clamps to 512 -> 2 parallel grid steps
    x = jax.random.normal(k_x, (N, IN_DIM), jnp.float32)
    params = init_params(k_p)

    out = shadow_v4_mlp(x, params)
    out = jax.block_until_ready(out)

    ref = reference_forward(x, params)
    assert out.shape == (N, OUT_DIM)
    # bf16 MXU operands -> compare against the f32 reference with a bf16-level tolerance.
    max_err = float(jnp.max(jnp.abs(out - ref)))
    assert jnp.allclose(out, ref, atol=5e-2, rtol=5e-2), (
        f"mismatch vs reference, max_err={max_err}")

    print("KERNEL_OK")
</pallas_src>

<mosaic_0001>
module attributes {stable_mosaic.version = 11 : i64} {
  func.func @_shadow_v4_kernel(%arg0: i32, %arg1: memref<7x512xf32, #tpu.memory_space<vmem>>, %arg2: memref<192x7xbf16, #tpu.memory_space<vmem>>, %arg3: memref<192x1xf32, #tpu.memory_space<vmem>>, %arg4: memref<192x192xbf16, #tpu.memory_space<vmem>>, %arg5: memref<192x1xf32, #tpu.memory_space<vmem>>, %arg6: memref<4x192xbf16, #tpu.memory_space<vmem>>, %arg7: memref<4x1xf32, #tpu.memory_space<vmem>>, %arg8: memref<4x512xf32, #tpu.memory_space<vmem>>) attributes {dimension_semantics = [#tpu.dimension_semantics<parallel>], iteration_bounds = array<i64: 2>, scalar_prefetch = 0 : i64, scratch_operands = 0 : i64, tpu.core_type = #tpu.core_type<tc>, window_params = [{transform_indices = @transform_0, window_bounds = array<i64: 7, 512>}, {pipeline_mode = #tpu.pipeline_mode<synchronous>, transform_indices = @transform_1, window_bounds = array<i64: 192, 7>}, {pipeline_mode = #tpu.pipeline_mode<synchronous>, transform_indices = @transform_2, window_bounds = array<i64: 192, 1>}, {pipeline_mode = #tpu.pipeline_mode<synchronous>, transform_indices = @transform_3, window_bounds = array<i64: 192, 192>}, {pipeline_mode = #tpu.pipeline_mode<synchronous>, transform_indices = @transform_4, window_bounds = array<i64: 192, 1>}, {pipeline_mode = #tpu.pipeline_mode<synchronous>, transform_indices = @transform_5, window_bounds = array<i64: 4, 192>}, {pipeline_mode = #tpu.pipeline_mode<synchronous>, transform_indices = @transform_6, window_bounds = array<i64: 4, 1>}, {transform_indices = @transform_7, window_bounds = array<i64: 4, 512>}]} {
    %c0 = arith.constant 0 : index
    %c0_0 = arith.constant 0 : index
    %0 = vector.load %arg1[%c0, %c0_0] : memref<7x512xf32, #tpu.memory_space<vmem>>, vector<7x512xf32>
    %1 = arith.truncf %0 : vector<7x512xf32> to vector<7x512xbf16>
    %c0_1 = arith.constant 0 : index
    %c0_2 = arith.constant 0 : index
    %2 = vector.load %arg2[%c0_1, %c0_2] : memref<192x7xbf16, #tpu.memory_space<vmem>>, vector<192x7xbf16>
    %cst = arith.constant dense<0.000000e+00> : vector<192x512xf32>
    %3 = tpu.matmul %2, %1, %cst {dimension_numbers = #tpu.dot_dimension_numbers<[1], [0], [0], [1], [0, 0, 1, 1], [], []>} : vector<192x7xbf16>, vector<7x512xbf16>, vector<192x512xf32> -> vector<192x512xf32>
    %c0_3 = arith.constant 0 : index
    %c0_4 = arith.constant 0 : index
    %4 = vector.load %arg3[%c0_3, %c0_4] : memref<192x1xf32, #tpu.memory_space<vmem>>, vector<192x1xf32>
    %5 = vector.broadcast %4 : vector<192x1xf32> to vector<192x512xf32>
    %6 = arith.addf %3, %5 : vector<192x512xf32>
    %cst_5 = arith.constant 0.000000e+00 : f32
    %7 = vector.broadcast %cst_5 : f32 to vector<192x512xf32>
    %8 = arith.maximumf %6, %7 : vector<192x512xf32>
    %c0_6 = arith.constant 0 : index
    %c0_7 = arith.constant 0 : index
    %9 = vector.load %arg4[%c0_6, %c0_7] : memref<192x192xbf16, #tpu.memory_space<vmem>>, vector<192x192xbf16>
    %10 = arith.truncf %8 : vector<192x512xf32> to vector<192x512xbf16>
    %cst_8 = arith.constant dense<0.000000e+00> : vector<192x512xf32>
    %11 = tpu.matmul %9, %10, %cst_8 {dimension_numbers = #tpu.dot_dimension_numbers<[1], [0], [0], [1], [0, 0, 1, 1], [], []>} : vector<192x192xbf16>, vector<192x512xbf16>, vector<192x512xf32> -> vector<192x512xf32>
    %c0_9 = arith.constant 0 : index
    %c0_10 = arith.constant 0 : index
    %12 = vector.load %arg5[%c0_9, %c0_10] : memref<192x1xf32, #tpu.memory_space<vmem>>, vector<192x1xf32>
    %13 = vector.broadcast %12 : vector<192x1xf32> to vector<192x512xf32>
    %14 = arith.addf %11, %13 : vector<192x512xf32>
    %cst_11 = arith.constant 0.000000e+00 : f32
    %15 = vector.broadcast %cst_11 : f32 to vector<192x512xf32>
    %16 = arith.maximumf %14, %15 : vector<192x512xf32>
    %c0_12 = arith.constant 0 : index
    %c0_13 = arith.constant 0 : index
    %17 = vector.load %arg6[%c0_12, %c0_13] : memref<4x192xbf16, #tpu.memory_space<vmem>>, vector<4x192xbf16>
    %18 = arith.truncf %16 : vector<192x512xf32> to vector<192x512xbf16>
    %cst_14 = arith.constant dense<0.000000e+00> : vector<4x512xf32>
    %19 = tpu.matmul %17, %18, %cst_14 {dimension_numbers = #tpu.dot_dimension_numbers<[1], [0], [0], [1], [0, 0, 1, 1], [], []>} : vector<4x192xbf16>, vector<192x512xbf16>, vector<4x512xf32> -> vector<4x512xf32>
    %c0_15 = arith.constant 0 : index
    %c0_16 = arith.constant 0 : index
    %20 = vector.load %arg7[%c0_15, %c0_16] : memref<4x1xf32, #tpu.memory_space<vmem>>, vector<4x1xf32>
    %21 = vector.broadcast %20 : vector<4x1xf32> to vector<4x512xf32>
    %22 = arith.addf %19, %21 : vector<4x512xf32>
    %c0_17 = arith.constant 0 : index
    %c0_18 = arith.constant 0 : index
    %23 = vector.load %arg8[%c0_17, %c0_18] : memref<4x512xf32, #tpu.memory_space<vmem>>, vector<4x512xf32>
    tpu.vector_store %arg8[%c0_17, %c0_18], %22 {strides = array<i32>} : memref<4x512xf32, #tpu.memory_space<vmem>>, vector<4x512xf32>,
    return
  }
  func.func @transform_0(%arg0: i32) -> (i32, i32) {
    %c0_i32 = arith.constant 0 : i32
    %c0_i32_0 = arith.constant 0 : i32
    return %c0_i32, %arg0 : i32, i32
  }
  func.func @transform_1(%arg0: i32) -> (i32, i32) {
    %c0_i32 = arith.constant 0 : i32
    %c0_i32_0 = arith.constant 0 : i32
    %c0_i32_1 = arith.constant 0 : i32
    return %c0_i32, %c0_i32_0 : i32, i32
  }
  func.func @transform_2(%arg0: i32) -> (i32, i32) {
    %c0_i32 = arith.constant 0 : i32
    %c0_i32_0 = arith.constant 0 : i32
    %c0_i32_1 = arith.constant 0 : i32
    return %c0_i32, %c0_i32_0 : i32, i32
  }
  func.func @transform_3(%arg0: i32) -> (i32, i32) {
    %c0_i32 = arith.constant 0 : i32
    %c0_i32_0 = arith.constant 0 : i32
    %c0_i32_1 = arith.constant 0 : i32
    return %c0_i32, %c0_i32_0 : i32, i32
  }
  func.func @transform_4(%arg0: i32) -> (i32, i32) {
    %c0_i32 = arith.constant 0 : i32
    %c0_i32_0 = arith.constant 0 : i32
    %c0_i32_1 = arith.constant 0 : i32
    return %c0_i32, %c0_i32_0 : i32, i32
  }
  func.func @transform_5(%arg0: i32) -> (i32, i32) {
    %c0_i32 = arith.constant 0 : i32
    %c0_i32_0 = arith.constant 0 : i32
    %c0_i32_1 = arith.constant 0 : i32
    return %c0_i32, %c0_i32_0 : i32, i32
  }
  func.func @transform_6(%arg0: i32) -> (i32, i32) {
    %c0_i32 = arith.constant 0 : i32
    %c0_i32_0 = arith.constant 0 : i32
    %c0_i32_1 = arith.constant 0 : i32
    return %c0_i32, %c0_i32_0 : i32, i32
  }
  func.func @transform_7(%arg0: i32) -> (i32, i32) {
    %c0_i32 = arith.constant 0 : i32
    %c0_i32_0 = arith.constant 0 : i32
    return %c0_i32, %arg0 : i32, i32
  }
}

</mosaic_0001>

<llo_original>
// kernel: shadow_v4_mlp.1
$region0: #{shadow_v4_mlp.1}
  #allocation0 [shape = 'u32[]', space=smem, size = 0x4, offset = 0x4, fixed_abs, tag = 'smem constant byte address 0x4 - core index']
  #allocation1 [shape = 'u32[144,128]{1,0:T(1,128)}', space=vmem, size = 0x12000, scoped, tag = 'internal scratch']
  %s0 = inlined_call_operand.vmem [shape: f32[7,1024], index: 0, kind: input, shape index: {}]
  %s1 = inlined_call_operand.vmem [shape: bf16[192,7], index: 1, kind: input, shape index: {}]
  %s2 = inlined_call_operand.vmem [shape: f32[192,1], index: 2, kind: input, shape index: {}]
  %s3 = inlined_call_operand.vmem [shape: bf16[192,192], index: 3, kind: input, shape index: {}]
  %s4 = inlined_call_operand.vmem [shape: f32[192,1], index: 4, kind: input, shape index: {}]
  %s5 = inlined_call_operand.vmem [shape: bf16[4,192], index: 5, kind: input, shape index: {}]
  %s6 = inlined_call_operand.vmem [shape: f32[4,1], index: 6, kind: input, shape index: {}]
  %s7 = inlined_call_operand.hbm [shape: f32[4,1024], index: 7, kind: output, shape index: {}]
  %s8 = sld [smem:[#allocation0]]
  $region61: #{shadow_v4_mlp.1} parent=0
    _
  %s10 = ssub.s32 1, %s8
  %s11 = scalar_select 0, %s10, %s8
  $region1: #{shadow_v4_mlp.1} parent=0
    #allocation2 [shape = 'u8[16384]{0}', space=vmem, size = 0x4000, scoped, tag = 'output window, operand 0']
    #allocation3 [shape = 's32[2]{0}', space=sflag, size = 0x8, scoped, tag = 'scoped memory for shadow_v4_mlp.1']
    %12 = vsyncpa [#allocation3], 0
    %s13 = scalar_lea.sflag [#allocation3], 1
    %14 = vsyncpa %s13, 0
    loop: start=0, step=1, limit=4
    $region2: #{shadow_v4_mlp.1} parent=1 // loop_pre_header
      _
    $region3: #{shadow_v4_mlp.1} parent=1 // loop_header
      %s16 = sphi 0, %s20
      %p17 = scmp.ge.s32.totalorder %s16, 4
      %s26 = sphi 0, %s28
      %s29 = sphi 0, %s26
      %s30 = sphi 0, %s29
      %s46 = sphi 0, %s30
      %s50 = sphi 0, %s50
      %s52 = sphi 0, %s50
      %s53 = sphi 0, %s52
      %s67 = sphi 0, %s53
      %s71 = sphi 0, %s71
      %s73 = sphi 0, %s71
      %s74 = sphi 0, %s73
      %s88 = sphi 0, %s74
      %s92 = sphi 0, %s92
      %s94 = sphi 0, %s92
      %s95 = sphi 0, %s94
      %s109 = sphi 0, %s95
      %s113 = sphi 0, %s113
      %s115 = sphi 0, %s113
      %s116 = sphi 0, %s115
      %s130 = sphi 0, %s116
      %s134 = sphi 0, %s134
      %s136 = sphi 0, %s134
      %s137 = sphi 0, %s136
      %s151 = sphi 0, %s137
      %s155 = sphi 0, %s155
      %s157 = sphi 0, %s155
      %s158 = sphi 0, %s157
      %s172 = sphi 0, %s158
      %s178 = sphi 0, %s180
      %s181 = sphi 0, %s178
      %s182 = sphi 0, %s181
      %s198 = sphi 0, %s182
    $region4: #{shadow_v4_mlp.1} parent=1 // loop_header_branch
      %19 = sbr.rel (%p17) target = $region8
    $region5: #{shadow_v4_mlp.1} parent=1 // loop_body
      %s21 = ssub.s32 %s16, 1
      %s22 = ssub.s32 %s16, 2
      %s23 = sadd.s32 %s16, 1
      %s24 = ssub.s32 %s16, %s23
      %p25 = scmp.eq.s32.totalorder %s24, 0
      %s27 = sadd.s32 %s26, 1
      %s28 = scalar_select %p25, %s26, %s27
      %p31 = pneg %p25
      %p32 = scmp.eq.s32.totalorder %s16, 1
      %p33 = por %p31, %p32
      %p34 = scmp.ne.s32.totalorder %s26, %s29
      %p35 = scmp.eq.s32.totalorder %s16, 0
      %p36 = por %p34, %p35
      %p37 = scmp.ne.s32.totalorder %s26, %s29
      %p38 = scmp.eq.s32.totalorder %s21, 1
      %p39 = por %p37, %p38
      %p40 = scmp.ne.s32.totalorder %s29, %s30
      %p41 = scmp.eq.s32.totalorder %s21, 0
      %p42 = por %p40, %p41
      %p43 = scmp.ne.s32.totalorder %s29, %s30
      %p44 = scmp.eq.s32.totalorder %s22, 1
      %p45 = por %p43, %p44
      %p47 = scmp.ne.s32.totalorder %s30, %s46
      %p48 = scmp.eq.s32.totalorder %s22, 0
      %p49 = por %p47, %p48
      %s51 = sadd.s32 %s50, 1
      %p54 = scmp.eq.s32.totalorder %s16, 1
      %p55 = scmp.ne.s32.totalorder %s50, %s52
      %p56 = scmp.eq.s32.totalorder %s16, 0
      %p57 = por %p55, %p56
      %p58 = scmp.ne.s32.totalorder %s50, %s52
      %p59 = scmp.eq.s32.totalorder %s21, 1
      %p60 = por %p58, %p59
      %p61 = scmp.ne.s32.totalorder %s52, %s53
      %p62 = scmp.eq.s32.totalorder %s21, 0
      %p63 = por %p61, %p62
      %p64 = scmp.ne.s32.totalorder %s52, %s53
      %p65 = scmp.eq.s32.totalorder %s22, 1
      %p66 = por %p64, %p65
      %p68 = scmp.ne.s32.totalorder %s53, %s67
      %p69 = scmp.eq.s32.totalorder %s22, 0
      %p70 = por %p68, %p69
      %s72 = sadd.s32 %s71, 1
      %p75 = scmp.eq.s32.totalorder %s16, 1
      %p76 = scmp.ne.s32.totalorder %s71, %s73
      %p77 = scmp.eq.s32.totalorder %s16, 0
      %p78 = por %p76, %p77
      %p79 = scmp.ne.s32.totalorder %s71, %s73
      %p80 = scmp.eq.s32.totalorder %s21, 1
      %p81 = por %p79, %p80
      %p82 = scmp.ne.s32.totalorder %s73, %s74
      %p83 = scmp.eq.s32.totalorder %s21, 0
      %p84 = por %p82, %p83
      %p85 = scmp.ne.s32.totalorder %s73, %s74
      %p86 = scmp.eq.s32.totalorder %s22, 1
      %p87 = por %p85, %p86
      %p89 = scmp.ne.s32.totalorder %s74, %s88
      %p90 = scmp.eq.s32.totalorder %s22, 0
      %p91 = por %p89, %p90
      %s93 = sadd.s32 %s92, 1
      %p96 = scmp.eq.s32.totalorder %s16, 1
      %p97 = scmp.ne.s32.totalorder %s92, %s94
      %p98 = scmp.eq.s32.totalorder %s16, 0
      %p99 = por %p97, %p98
      %p100 = scmp.ne.s32.totalorder %s92, %s94
      %p101 = scmp.eq.s32.totalorder %s21, 1
      %p102 = por %p100, %p101
      %p103 = scmp.ne.s32.totalorder %s94, %s95
      %p104 = scmp.eq.s32.totalorder %s21, 0
      %p105 = por %p103, %p104
      %p106 = scmp.ne.s32.totalorder %s94, %s95
      %p107 = scmp.eq.s32.totalorder %s22, 1
      %p108 = por %p106, %p107
      %p110 = scmp.ne.s32.totalorder %s95, %s109
      %p111 = scmp.eq.s32.totalorder %s22, 0
      %p112 = por %p110, %p111
      %s114 = sadd.s32 %s113, 1
      %p117 = scmp.eq.s32.totalorder %s16, 1
      %p118 = scmp.ne.s32.totalorder %s113, %s115
      %p119 = scmp.eq.s32.totalorder %s16, 0
      %p120 = por %p118, %p119
      %p121 = scmp.ne.s32.totalorder %s113, %s115
      %p122 = scmp.eq.s32.totalorder %s21, 1
      %p123 = por %p121, %p122
      %p124 = scmp.ne.s32.totalorder %s115, %s116
      %p125 = scmp.eq.s32.totalorder %s21, 0
      %p126 = por %p124, %p125
      %p127 = scmp.ne.s32.totalorder %s115, %s116
      %p128 = scmp.eq.s32.totalorder %s22, 1
      %p129 = por %p127, %p128
      %p131 = scmp.ne.s32.totalorder %s116, %s130
      %p132 = scmp.eq.s32.totalorder %s22, 0
      %p133 = por %p131, %p132
      %s135 = sadd.s32 %s134, 1
      %p138 = scmp.eq.s32.totalorder %s16, 1
      %p139 = scmp.ne.s32.totalorder %s134, %s136
      %p140 = scmp.eq.s32.totalorder %s16, 0
      %p141 = por %p139, %p140
      %p142 = scmp.ne.s32.totalorder %s134, %s136
      %p143 = scmp.eq.s32.totalorder %s21, 1
      %p144 = por %p142, %p143
      %p145 = scmp.ne.s32.totalorder %s136, %s137
      %p146 = scmp.eq.s32.totalorder %s21, 0
      %p147 = por %p145, %p146
      %p148 = scmp.ne.s32.totalorder %s136, %s137
      %p149 = scmp.eq.s32.totalorder %s22, 1
      %p150 = por %p148, %p149
      %p152 = scmp.ne.s32.totalorder %s137, %s151
      %p153 = scmp.eq.s32.totalorder %s22, 0
      %p154 = por %p152, %p153
      %s156 = sadd.s32 %s155, 1
      %p159 = scmp.eq.s32.totalorder %s16, 1
      %p160 = scmp.ne.s32.totalorder %s155, %s157
      %p161 = scmp.eq.s32.totalorder %s16, 0
      %p162 = por %p160, %p161
      %p163 = scmp.ne.s32.totalorder %s155, %s157
      %p164 = scmp.eq.s32.totalorder %s21, 1
      %p165 = por %p163, %p164
      %p166 = scmp.ne.s32.totalorder %s157, %s158
      %p167 = scmp.eq.s32.totalorder %s21, 0
      %p168 = por %p166, %p167
      %p169 = scmp.ne.s32.totalorder %s157, %s158
      %p170 = scmp.eq.s32.totalorder %s22, 1
      %p171 = por %p169, %p170
      %p173 = scmp.ne.s32.totalorder %s158, %s172
      %p174 = scmp.eq.s32.totalorder %s22, 0
      %p175 = por %p173, %p174
      %s176 = ssub.s32 %s16, %s23
      %p177 = scmp.eq.s32.totalorder %s176, 0
      %s179 = sadd.s32 %s178, 1
      %s180 = scalar_select %p177, %s178, %s179
      %p183 = pneg %p177
      %p184 = scmp.eq.s32.totalorder %s16, 1
      %p185 = por %p183, %p184
      %p186 = scmp.ne.s32.totalorder %s178, %s181
      %p187 = scmp.eq.s32.totalorder %s16, 0
      %p188 = por %p186, %p187
      %p189 = scmp.ne.s32.totalorder %s178, %s181
      %p190 = scmp.eq.s32.totalorder %s21, 1
      %p191 = por %p189, %p190
      %p192 = scmp.ne.s32.totalorder %s181, %s182
      %p193 = scmp.eq.s32.totalorder %s21, 0
      %p194 = por %p192, %p193
      %p195 = scmp.ne.s32.totalorder %s181, %s182
      %p196 = scmp.eq.s32.totalorder %s22, 1
      %p197 = por %p195, %p196
      %p199 = scmp.ne.s32.totalorder %s182, %s198
      %p200 = scmp.eq.s32.totalorder %s22, 0
      %p201 = por %p199, %p200
      %p202 = scmp.le.s32.totalorder 1, %s16
      %p203 = scmp.lt.s32.totalorder %s16, 3
      %p204 = pnand %p202, %p203
      %p205 = pneg %p204
      // Predicated region
      $region9: #{shadow_v4_mlp.1} parent=5 // pred_check
        _
      $region10: #{shadow_v4_mlp.1} parent=5 // pred_check_branch
        %207 = sbr.rel (%p204) target = $region12
      $region11: #{shadow_v4_mlp.1} parent=5 // pred_region
        %s208 = ssub.s32 %s16, 1
        // Predicated region
        $region13: #{shadow_v4_mlp.1} parent=11 // pred_check
          %p209 = pneg %p63
        $region14: #{shadow_v4_mlp.1} parent=11 // pred_check_branch
          %211 = sbr.rel (%p209) target = $region16
        $region15: #{shadow_v4_mlp.1} parent=11 // pred_region
          _
        $region16: #{shadow_v4_mlp.1} parent=11 // pred_fallthru
          _
        // Predicated region
        $region17: #{shadow_v4_mlp.1} parent=11 // pred_check
          %p212 = pneg %p84
        $region18: #{shadow_v4_mlp.1} parent=11 // pred_check_branch
          %214 = sbr.rel (%p212) target = $region20
        $region19: #{shadow_v4_mlp.1} parent=11 // pred_region
          _
        $region20: #{shadow_v4_mlp.1} parent=11 // pred_fallthru
          _
        // Predicated region
        $region21: #{shadow_v4_mlp.1} parent=11 // pred_check
          %p215 = pneg %p105
        $region22: #{shadow_v4_mlp.1} parent=11 // pred_check_branch
          %217 = sbr.rel (%p215) target = $region24
        $region23: #{shadow_v4_mlp.1} parent=11 // pred_region
          _
        $region24: #{shadow_v4_mlp.1} parent=11 // pred_fallthru
          _
        // Predicated region
        $region25: #{shadow_v4_mlp.1} parent=11 // pred_check
          %p218 = pneg %p126
        $region26: #{shadow_v4_mlp.1} parent=11 // pred_check_branch
          %220 = sbr.rel (%p218) target = $region28
        $region27: #{shadow_v4_mlp.1} parent=11 // pred_region
          _
        $region28: #{shadow_v4_mlp.1} parent=11 // pred_fallthru
          _
        // Predicated region
        $region29: #{shadow_v4_mlp.1} parent=11 // pred_check
          %p221 = pneg %p147
        $region30: #{shadow_v4_mlp.1} parent=11 // pred_check_branch
          %223 = sbr.rel (%p221) target = $region32
        $region31: #{shadow_v4_mlp.1} parent=11 // pred_region
          _
        $region32: #{shadow_v4_mlp.1} parent=11 // pred_fallthru
          _
        // Predicated region
        $region33: #{shadow_v4_mlp.1} parent=11 // pred_check
          %p224 = pneg %p168
        $region34: #{shadow_v4_mlp.1} parent=11 // pred_check_branch
          %226 = sbr.rel (%p224) target = $region36
        $region35: #{shadow_v4_mlp.1} parent=11 // pred_region
          _
        $region36: #{shadow_v4_mlp.1} parent=11 // pred_fallthru
          _
      $region12: #{shadow_v4_mlp.1} parent=5 // pred_fallthru
        _
      %p227 = scmp.lt.s32.totalorder %s16, 2
      // Predicated region
      $region37: #{shadow_v4_mlp.1} parent=5 // pred_check
        %p228 = pneg %p227
      $region38: #{shadow_v4_mlp.1} parent=5 // pred_check_branch
        %230 = sbr.rel (%p228) target = $region40
      $region39: #{shadow_v4_mlp.1} parent=5 // pred_region
        // Predicated region
        $region41: #{shadow_v4_mlp.1} parent=39 // pred_check
          %p231 = pneg %p36
        $region42: #{shadow_v4_mlp.1} parent=39 // pred_check_branch
          %233 = sbr.rel (%p231) target = $region44
        $region43: #{shadow_v4_mlp.1} parent=39 // pred_region
          %s234 = smul.u32 4, %s16
          %p235 = scmp.lt.s32.totalorder %s234, 7
          %s236 = scalar_select %p235, %s234, 7
          %s237 = smul.addr %s236, 8
          %s238 = scalar_lea.vmem %s0, %s237
          %s239 = smul.u32 4, %s16
        $region44: #{shadow_v4_mlp.1} parent=39 // pred_fallthru
          _
      $region40: #{shadow_v4_mlp.1} parent=5 // pred_fallthru
        _
      %p240 = scmp.le.s32.totalorder 1, %s16
      %p241 = scmp.lt.s32.totalorder %s16, 3
      %p242 = pnand %p240, %p241
      %p243 = pneg %p242
      // Predicated region
      $region45: #{shadow_v4_mlp.1} parent=5 // pred_check
        _
      $region46: #{shadow_v4_mlp.1} parent=5 // pred_check_branch
        %245 = sbr.rel (%p242) target = $region48
      $region47: #{shadow_v4_mlp.1} parent=5 // pred_region
        %s246 = ssub.s32 %s16, 1
        %s247 = smul.u32 4, %s21
        %p248 = scmp.lt.s32.totalorder %s247, 7
        %s249 = scalar_select %p248, %s247, 7
        %s250 = smul.addr %s249, 8
        %s251 = scalar_lea.vmem %s0, %s250
        %p252 = pneg %p42
        %p253 = pneg %p39
        %p254 = pneg %p63
        %p255 = pneg %p60
        %p256 = pneg %p84
        %p257 = pneg %p81
        %p258 = pneg %p105
        %p259 = pneg %p102
        %p260 = pneg %p126
        %p261 = pneg %p123
        %p262 = pneg %p147
        %p263 = pneg %p144
        %p264 = pneg %p168
        %p265 = pneg %p165
        %p266 = pneg %p194
        %p267 = pneg %p191
        %s268 = sand.u32 %s181, 1
        %s269 = scalar_lea.sflag [#allocation3], %s268
        %s270 = sand.u32 %s181, 1
        %s271 = smul.addr %s270, 16
        %s272 = scalar_lea.vmem [#allocation2], %s271
        %s273 = smul.u32 4, %s21
        %p274 = scmp.lt.s32.totalorder %s273, 7
        %s275 = scalar_select %p274, %s273, 7
        %s276 = smul.addr %s275, 8
        %s277 = scalar_lea.vmem %s0, %s276
        %s278 = smul.u32 4, %s21
        %s279 = smul.u32 4, %s21
        %v281 = vld [vmem:[%s277] sm:$0x7f]
        %v282 = vld [vmem:[%s277 + $0x8] sm:$0x7f]
        %v283 = vld [vmem:[%s277 + $0x10] sm:$0x7f]
        %v284 = vld [vmem:[%s277 + $0x18] sm:$0x7f]
        %v285 = vpack.c.bf16 %v281, %v281
        %v286 = vpack.c.bf16 %v282, %v282
        %v287 = vpack.c.bf16 %v283, %v283
        %v288 = vpack.c.bf16 %v284, %v284
        %v289 = vld [vmem:[%s1] sm:$0xf]
        %v290 = vld [vmem:[%s1 + $0x4] sm:$0xf]
        %v291 = vld [vmem:[%s1 + $0x8] sm:$0xf]
        %v292 = vld [vmem:[%s1 + $0xc] sm:$0xf]
        %v293 = vld [vmem:[%s1 + $0x10] sm:$0xf]
        %v294 = vld [vmem:[%s1 + $0x14] sm:$0xf]
        %v295 = vld [vmem:[%s1 + $0x18] sm:$0xf]
        %v296 = vld [vmem:[%s1 + $0x1c] sm:$0xf]
        %v297 = vld [vmem:[%s1 + $0x20] sm:$0xf]
        %v298 = vld [vmem:[%s1 + $0x24] sm:$0xf]
        %v299 = vld [vmem:[%s1 + $0x28] sm:$0xf]
        %v300 = vld [vmem:[%s1 + $0x2c] sm:$0xf]
        %v301 = vld [vmem:[%s1 + $0x30] sm:$0xf]
        %v302 = vld [vmem:[%s1 + $0x34] sm:$0xf]
        %v303 = vld [vmem:[%s1 + $0x38] sm:$0xf]
        %v304 = vld [vmem:[%s1 + $0x3c] sm:$0xf]
        %v305 = vld [vmem:[%s1 + $0x40] sm:$0xf]
        %v306 = vld [vmem:[%s1 + $0x44] sm:$0xf]
        %v307 = vld [vmem:[%s1 + $0x48] sm:$0xf]
        %v308 = vld [vmem:[%s1 + $0x4c] sm:$0xf]
        %v309 = vld [vmem:[%s1 + $0x50] sm:$0xf]
        %v310 = vld [vmem:[%s1 + $0x54] sm:$0xf]
        %v311 = vld [vmem:[%s1 + $0x58] sm:$0xf]
        %v312 = vld [vmem:[%s1 + $0x5c] sm:$0xf]
        %v313 = vld [vmem:[%s2] sm:$0xff]
        %v314 = vld [vmem:[%s2 + $0x8] sm:$0xff]
        %v315 = vld [vmem:[%s2 + $0x10] sm:$0xff]
        %v316 = vld [vmem:[%s2 + $0x18] sm:$0xff]
        %v317 = vld [vmem:[%s2 + $0x20] sm:$0xff]
        %v318 = vld [vmem:[%s2 + $0x28] sm:$0xff]
        %v319 = vld [vmem:[%s2 + $0x30] sm:$0xff]
        %v320 = vld [vmem:[%s2 + $0x38] sm:$0xff]
        %v321 = vld [vmem:[%s2 + $0x40] sm:$0xff]
        %v322 = vld [vmem:[%s2 + $0x48] sm:$0xff]
        %v323 = vld [vmem:[%s2 + $0x50] sm:$0xff]
        %v324 = vld [vmem:[%s2 + $0x58] sm:$0xff]
        %v325 = vld [vmem:[%s2 + $0x60] sm:$0xff]
        %v326 = vld [vmem:[%s2 + $0x68] sm:$0xff]
        %v327 = vld [vmem:[%s2 + $0x70] sm:$0xff]
        %v328 = vld [vmem:[%s2 + $0x78] sm:$0xff]
        %v329 = vld [vmem:[%s2 + $0x80] sm:$0xff]
        %v330 = vld [vmem:[%s2 + $0x88] sm:$0xff]
        %v331 = vld [vmem:[%s2 + $0x90] sm:$0xff]
        %v332 = vld [vmem:[%s2 + $0x98] sm:$0xff]
        %v333 = vld [vmem:[%s2 + $0xa0] sm:$0xff]
        %v334 = vld [vmem:[%s2 + $0xa8] sm:$0xff]
        %v335 = vld [vmem:[%s2 + $0xb0] sm:$0xff]
        %v336 = vld [vmem:[%s2 + $0xb8] sm:$0xff]
        %338 = vset.pattern.permute.xlu0 0
        %339 = vperm.xlu0 %338, %v313
        %v340 = vpop.permute.xlu0 %339
        %343 = vset.pattern.permute.xlu0 0
        %344 = vperm.xlu0 %343, %v314
        %v345 = vpop.permute.xlu0 %344
        %348 = vset.pattern.permute.xlu0 0
        %349 = vperm.xlu0 %348, %v315
        %v350 = vpop.permute.xlu0 %349
        %353 = vset.pattern.permute.xlu0 0
        %354 = vperm.xlu0 %353, %v316
        %v355 = vpop.permute.xlu0 %354
        %358 = vset.pattern.permute.xlu0 0
        %359 = vperm.xlu0 %358, %v317
        %v360 = vpop.permute.xlu0 %359
        %363 = vset.pattern.permute.xlu0 0
        %364 = vperm.xlu0 %363, %v318
        %v365 = vpop.permute.xlu0 %364
        %368 = vset.pattern.permute.xlu0 0
        %369 = vperm.xlu0 %368, %v319
        %v370 = vpop.permute.xlu0 %369
        %373 = vset.pattern.permute.xlu0 0
        %374 = vperm.xlu0 %373, %v320
        %v375 = vpop.permute.xlu0 %374
        %378 = vset.pattern.permute.xlu0 0
        %379 = vperm.xlu0 %378, %v321
        %v380 = vpop.permute.xlu0 %379
        %383 = vset.pattern.permute.xlu0 0
        %384 = vperm.xlu0 %383, %v322
        %v385 = vpop.permute.xlu0 %384
        %388 = vset.pattern.permute.xlu0 0
        %389 = vperm.xlu0 %388, %v323
        %v390 = vpop.permute.xlu0 %389
        %393 = vset.pattern.permute.xlu0 0
        %394 = vperm.xlu0 %393, %v324
        %v395 = vpop.permute.xlu0 %394
        %398 = vset.pattern.permute.xlu0 0
        %399 = vperm.xlu0 %398, %v325
        %v400 = vpop.permute.xlu0 %399
        %403 = vset.pattern.permute.xlu0 0
        %404 = vperm.xlu0 %403, %v326
        %v405 = vpop.permute.xlu0 %404
        %408 = vset.pattern.permute.xlu0 0
        %409 = vperm.xlu0 %408, %v327
        %v410 = vpop.permute.xlu0 %409
        %413 = vset.pattern.permute.xlu0 0
        %414 = vperm.xlu0 %413, %v328
        %v415 = vpop.permute.xlu0 %414
        %418 = vset.pattern.permute.xlu0 0
        %419 = vperm.xlu0 %418, %v329
        %v420 = vpop.permute.xlu0 %419
        %423 = vset.pattern.permute.xlu0 0
        %424 = vperm.xlu0 %423, %v330
        %v425 = vpop.permute.xlu0 %424
        %428 = vset.pattern.permute.xlu0 0
        %429 = vperm.xlu0 %428, %v331
        %v430 = vpop.permute.xlu0 %429
        %433 = vset.pattern.permute.xlu0 0
        %434 = vperm.xlu0 %433, %v332
        %v435 = vpop.permute.xlu0 %434
        %438 = vset.pattern.permute.xlu0 0
        %439 = vperm.xlu0 %438, %v333
        %v440 = vpop.permute.xlu0 %439
        %443 = vset.pattern.permute.xlu0 0
        %444 = vperm.xlu0 %443, %v334
        %v445 = vpop.permute.xlu0 %444
        %448 = vset.pattern.permute.xlu0 0
        %449 = vperm.xlu0 %448, %v335
        %v450 = vpop.permute.xlu0 %449
        %453 = vset.pattern.permute.xlu0 0
        %454 = vperm.xlu0 %453, %v336
        %v455 = vpop.permute.xlu0 %454
        %v481 = vunpack.c.l.b16 %v289
        %v482 = vunpack.c.l.b16 %v290
        %v483 = vunpack.c.l.b16 %v291
        %v484 = vunpack.c.l.b16 %v292
        %v485 = vunpack.c.l.b16 %v293
        %v486 = vunpack.c.l.b16 %v294
        %v487 = vunpack.c.l.b16 %v295
        %v488 = vunpack.c.l.b16 %v296
        %v489 = vunpack.c.l.b16 %v297
        %v490 = vunpack.c.l.b16 %v298
        %v491 = vunpack.c.l.b16 %v299
        %v492 = vunpack.c.l.b16 %v300
        %v493 = vunpack.c.l.b16 %v301
        %v494 = vunpack.c.l.b16 %v302
        %v495 = vunpack.c.l.b16 %v303
        %v496 = vunpack.c.l.b16 %v304
        %v497 = vunpack.c.l.b16 %v305
        %v498 = vunpack.c.l.b16 %v306
        %v499 = vunpack.c.l.b16 %v307
        %v500 = vunpack.c.l.b16 %v308
        %v501 = vunpack.c.l.b16 %v309
        %v502 = vunpack.c.l.b16 %v310
        %v503 = vunpack.c.l.b16 %v311
        %v504 = vunpack.c.l.b16 %v312
        %v505 = vpack.c.b16 %v482, %v481
        %v506 = vpack.c.b16 %v484, %v483
        %v507 = vpack.c.b16 %v486, %v485
        %v508 = vpack.c.b16 %v488, %v487
        %v509 = vpack.c.b16 %v490, %v489
        %v510 = vpack.c.b16 %v492, %v491
        %v511 = vpack.c.b16 %v494, %v493
        %v512 = vpack.c.b16 %v496, %v495
        %v513 = vpack.c.b16 %v498, %v497
        %v514 = vpack.c.b16 %v500, %v499
        %v515 = vpack.c.b16 %v502, %v501
        %v516 = vpack.c.b16 %v504, %v503
        %vm517 = vcmask 56320
        %v519 = vsel %vm517, %v505, 0
        %v522 = vsel %vm517, %v506, 0
        %v525 = vsel %vm517, %v507, 0
        %v528 = vsel %vm517, %v508, 0
        %v531 = vsel %vm517, %v509, 0
        %v534 = vsel %vm517, %v510, 0
        %v537 = vsel %vm517, %v511, 0
        %v540 = vsel %vm517, %v512, 0
        %v543 = vsel %vm517, %v513, 0
        %v546 = vsel %vm517, %v514, 0
        %v549 = vsel %vm517, %v515, 0
        %v552 = vsel %vm517, %v516, 0
        %vm554 = vcmask 1042432
        %vm555 = vcmask 1043456
        %v556 = vsel %vm554, 4294967295, 65535
        %v557 = vsel %vm555, %v556, 0
        %v559 = vand.u32 %v285, %v557
        %v562 = vand.u32 %v286, %v557
        %v565 = vand.u32 %v287, %v557
        %v568 = vand.u32 %v288, %v557
        %570 = vmatprep.subr.bf16.mxu0 0
        %571 = vmatpush1.bf16.msra.mxu0 0
        %572 = vmatprep.subr.bf16.mxu0 0
        %573 = vmatpush1.bf16.msra.mxu0 0
        %574 = vmatprep.subr.bf16.mxu0 0
        %575 = vmatpush1.bf16.msra.mxu0 0
        %576 = vmatprep.subr.bf16.mxu0 0
        %577 = vmatpush1.bf16.msra.mxu0 0
        %578 = vmatprep.subr.bf16.mxu0 0
        %579 = vmatpush1.bf16.msra.mxu0 0
        %580 = vmatprep.subr.bf16.mxu0 0
        %581 = vmatpush1.bf16.msra.mxu0 0
        %582 = vmatprep.subr.bf16.mxu0 0
        %583 = vmatpush1.bf16.msra.mxu0 0
        %584 = vmatprep.subr.bf16.mxu0 %v562
        %585 = vmatpush1.bf16.msra.mxu0 %v559
        %586 = vmatprep.subr.bf16.mxu0 0
        %587 = vmatpush2.bf16.msra.mxu0 0
        %588 = vmatprep.subr.bf16.mxu0 0
        %589 = vmatpush2.bf16.msra.mxu0 0
        %590 = vmatprep.subr.bf16.mxu0 0
        %591 = vmatpush2.bf16.msra.mxu0 0
        %592 = vmatprep.subr.bf16.mxu0 0
        %593 = vmatpush2.bf16.msra.mxu0 0
        %594 = vmatprep.subr.bf16.mxu0 0
        %595 = vmatpush2.bf16.msra.mxu0 0
        %596 = vmatprep.subr.bf16.mxu0 0
        %597 = vmatpush2.bf16.msra.mxu0 0
        %598 = vmatprep.subr.bf16.mxu0 0
        %599 = vmatpush2.bf16.msra.mxu0 0
        %600 = vmatprep.subr.bf16.mxu0 0
        %601 = vmatpush2.bf16.msra.mxu0 0
        %602 = vmatprep.mubr.bf16.mxu0 0
        %603 = vmatmul.mubr.bf16.gmra.mxu0 %v519
        %v604 = vpop.f32.mrf.mxu0
        %v605 = vadd.f32 %v340, %v604
        %v606 = vpop.f32.mrf.mxu0
        %v607 = vadd.f32 %v340, %v606
        %v608 = vpop.f32.mrf.mxu0
        %v609 = vadd.f32 %v345, %v608
        %v610 = vpop.f32.mrf.mxu0
        %v611 = vadd.f32 %v345, %v610
        %612 = vmatprep.mubr.bf16.mxu0 0
        %613 = vmatmul.mubr.bf16.gmra.mxu0 %v522
        %v614 = vpop.f32.mrf.mxu0
        %v615 = vadd.f32 %v350, %v614
        %v616 = vpop.f32.mrf.mxu0
        %v617 = vadd.f32 %v350, %v616
        %v618 = vpop.f32.mrf.mxu0
        %v619 = vadd.f32 %v355, %v618
        %v620 = vpop.f32.mrf.mxu0
        %v621 = vadd.f32 %v355, %v620
        %622 = vmatprep.mubr.bf16.mxu0 0
        %623 = vmatmul.mubr.bf16.gmra.mxu0 %v525
        %v624 = vpop.f32.mrf.mxu0
        %v625 = vadd.f32 %v360, %v624
        %v626 = vpop.f32.mrf.mxu0
        %v627 = vadd.f32 %v360, %v626
        %v628 = vpop.f32.mrf.mxu0
        %v629 = vadd.f32 %v365, %v628
        %v630 = vpop.f32.mrf.mxu0
        %v631 = vadd.f32 %v365, %v630
        %632 = vmatprep.mubr.bf16.mxu0 0
        %633 = vmatmul.mubr.bf16.gmra.mxu0 %v528
        %v634 = vpop.f32.mrf.mxu0
        %v635 = vadd.f32 %v370, %v634
        %v636 = vpop.f32.mrf.mxu0
        %v637 = vadd.f32 %v370, %v636
        %v638 = vpop.f32.mrf.mxu0
        %v639 = vadd.f32 %v375, %v638
        %v640 = vpop.f32.mrf.mxu0
        %v641 = vadd.f32 %v375, %v640
        %642 = vmatprep.mubr.bf16.mxu0 0
        %643 = vmatmul.mubr.bf16.gmra.mxu0 %v531
        %v644 = vpop.f32.mrf.mxu0
        %v645 = vadd.f32 %v380, %v644
        %v646 = vpop.f32.mrf.mxu0
        %v647 = vadd.f32 %v380, %v646
        %v648 = vpop.f32.mrf.mxu0
        %v649 = vadd.f32 %v385, %v648
        %v650 = vpop.f32.mrf.mxu0
        %v651 = vadd.f32 %v385, %v650
        %652 = vmatprep.mubr.bf16.mxu0 0
        %653 = vmatmul.mubr.bf16.gmra.mxu0 %v534
        %v654 = vpop.f32.mrf.mxu0
        %v655 = vadd.f32 %v390, %v654
        %v656 = vpop.f32.mrf.mxu0
        %v657 = vadd.f32 %v390, %v656
        %v658 = vpop.f32.mrf.mxu0
        %v659 = vadd.f32 %v395, %v658
        %v660 = vpop.f32.mrf.mxu0
        %v661 = vadd.f32 %v395, %v660
        %662 = vmatprep.mubr.bf16.mxu0 0
        %663 = vmatmul.mubr.bf16.gmra.mxu0 %v537
        %v664 = vpop.f32.mrf.mxu0
        %v665 = vadd.f32 %v400, %v664
        %v666 = vpop.f32.mrf.mxu0
        %v667 = vadd.f32 %v400, %v666
        %v668 = vpop.f32.mrf.mxu0
        %v669 = vadd.f32 %v405, %v668
        %v670 = vpop.f32.mrf.mxu0
        %v671 = vadd.f32 %v405, %v670
        %672 = vmatprep.mubr.bf16.mxu0 0
        %673 = vmatmul.mubr.bf16.gmra.mxu0 %v540
        %v674 = vpop.f32.mrf.mxu0
        %v675 = vadd.f32 %v410, %v674
        %v676 = vpop.f32.mrf.mxu0
        %v677 = vadd.f32 %v410, %v676
        %v678 = vpop.f32.mrf.mxu0
        %v679 = vadd.f32 %v415, %v678
        %v680 = vpop.f32.mrf.mxu0
        %v681 = vadd.f32 %v415, %v680
        %682 = vmatprep.mubr.bf16.mxu0 0
        %683 = vmatmul.mubr.bf16.gmra.mxu0 %v543
        %v684 = vpop.f32.mrf.mxu0
        %v685 = vadd.f32 %v420, %v684
        %v686 = vpop.f32.mrf.mxu0
        %v687 = vadd.f32 %v420, %v686
        %v688 = vpop.f32.mrf.mxu0
        %v689 = vadd.f32 %v425, %v688
        %v690 = vpop.f32.mrf.mxu0
        %v691 = vadd.f32 %v425, %v690
        %692 = vmatprep.mubr.bf16.mxu0 0
        %693 = vmatmul.mubr.bf16.gmra.mxu0 %v546
        %v694 = vpop.f32.mrf.mxu0
        %v695 = vadd.f32 %v430, %v694
        %v696 = vpop.f32.mrf.mxu0
        %v697 = vadd.f32 %v430, %v696
        %v698 = vpop.f32.mrf.mxu0
        %v699 = vadd.f32 %v435, %v698
        %v700 = vpop.f32.mrf.mxu0
        %v701 = vadd.f32 %v435, %v700
        %702 = vmatprep.mubr.bf16.mxu0 0
        %703 = vmatmul.mubr.bf16.gmra.mxu0 %v549
        %v704 = vpop.f32.mrf.mxu0
        %v705 = vadd.f32 %v440, %v704
        %v706 = vpop.f32.mrf.mxu0
        %v707 = vadd.f32 %v440, %v706
        %v708 = vpop.f32.mrf.mxu0
        %v709 = vadd.f32 %v445, %v708
        %v710 = vpop.f32.mrf.mxu0
        %v711 = vadd.f32 %v445, %v710
        %712 = vmatprep.mubr.bf16.mxu0 0
        %713 = vmatmul.mubr.bf16.gmra.mxu0 %v552
        %v714 = vpop.f32.mrf.mxu0
        %v715 = vadd.f32 %v450, %v714
        %v716 = vpop.f32.mrf.mxu0
        %v717 = vadd.f32 %v450, %v716
        %v718 = vpop.f32.mrf.mxu0
        %v719 = vadd.f32 %v455, %v718
        %v720 = vpop.f32.mrf.mxu0
        %v721 = vadd.f32 %v455, %v720
        %722 = vdwg.mxu0
        %723 = vmatprep.subr.bf16.mxu0 0
        %724 = vmatpush1.bf16.msra.mxu0 0
        %725 = vmatprep.subr.bf16.mxu0 0
        %726 = vmatpush1.bf16.msra.mxu0 0
        %727 = vmatprep.subr.bf16.mxu0 0
        %728 = vmatpush1.bf16.msra.mxu0 0
        %729 = vmatprep.subr.bf16.mxu0 0
        %730 = vmatpush1.bf16.msra.mxu0 0
        %731 = vmatprep.subr.bf16.mxu0 0
        %732 = vmatpush1.bf16.msra.mxu0 0
        %733 = vmatprep.subr.bf16.mxu0 0
        %734 = vmatpush1.bf16.msra.mxu0 0
        %735 = vmatprep.subr.bf16.mxu0 0
        %736 = vmatpush1.bf16.msra.mxu0 0
        %737 = vmatprep.subr.bf16.mxu0 %v568
        %738 = vmatpush1.bf16.msra.mxu0 %v565
        %739 = vmatprep.subr.bf16.mxu0 0
        %740 = vmatpush2.bf16.msra.mxu0 0
        %741 = vmatprep.subr.bf16.mxu0 0
        %742 = vmatpush2.bf16.msra.mxu0 0
        %743 = vmatprep.subr.bf16.mxu0 0
        %744 = vmatpush2.bf16.msra.mxu0 0
        %745 = vmatprep.subr.bf16.mxu0 0
        %746 = vmatpush2.bf16.msra.mxu0 0
        %747 = vmatprep.subr.bf16.mxu0 0
        %748 = vmatpush2.bf16.msra.mxu0 0
        %749 = vmatprep.subr.bf16.mxu0 0
        %750 = vmatpush2.bf16.msra.mxu0 0
        %751 = vmatprep.subr.bf16.mxu0 0
        %752 = vmatpush2.bf16.msra.mxu0 0
        %753 = vmatprep.subr.bf16.mxu0 0
        %754 = vmatpush2.bf16.msra.mxu0 0
        %755 = vmatprep.mubr.bf16.mxu0 0
        %756 = vmatmul.mubr.bf16.gmra.mxu0 %v519
        %v757 = vpop.f32.mrf.mxu0
        %v758 = vadd.f32 %v340, %v757
        %v759 = vpop.f32.mrf.mxu0
        %v760 = vadd.f32 %v340, %v759
        %v761 = vpop.f32.mrf.mxu0
        %v762 = vadd.f32 %v345, %v761
        %v763 = vpop.f32.mrf.mxu0
        %v764 = vadd.f32 %v345, %v763
        %765 = vmatprep.mubr.bf16.mxu0 0
        %766 = vmatmul.mubr.bf16.gmra.mxu0 %v522
        %v767 = vpop.f32.mrf.mxu0
        %v768 = vadd.f32 %v350, %v767
        %v769 = vpop.f32.mrf.mxu0
        %v770 = vadd.f32 %v350, %v769
        %v771 = vpop.f32.mrf.mxu0
        %v772 = vadd.f32 %v355, %v771
        %v773 = vpop.f32.mrf.mxu0
        %v774 = vadd.f32 %v355, %v773
        %775 = vmatprep.mubr.bf16.mxu0 0
        %776 = vmatmul.mubr.bf16.gmra.mxu0 %v525
        %v777 = vpop.f32.mrf.mxu0
        %v778 = vadd.f32 %v360, %v777
        %v779 = vpop.f32.mrf.mxu0
        %v780 = vadd.f32 %v360, %v779
        %v781 = vpop.f32.mrf.mxu0
        %v782 = vadd.f32 %v365, %v781
        %v783 = vpop.f32.mrf.mxu0
        %v784 = vadd.f32 %v365, %v783
        %785 = vmatprep.mubr.bf16.mxu0 0
        %786 = vmatmul.mubr.bf16.gmra.mxu0 %v528
        %v787 = vpop.f32.mrf.mxu0
        %v788 = vadd.f32 %v370, %v787
        %v789 = vpop.f32.mrf.mxu0
        %v790 = vadd.f32 %v370, %v789
        %v791 = vpop.f32.mrf.mxu0
        %v792 = vadd.f32 %v375, %v791
        %v793 = vpop.f32.mrf.mxu0
        %v794 = vadd.f32 %v375, %v793
        %795 = vmatprep.mubr.bf16.mxu0 0
        %796 = vmatmul.mubr.bf16.gmra.mxu0 %v531
        %v797 = vpop.f32.mrf.mxu0
        %v798 = vadd.f32 %v380, %v797
        %v799 = vpop.f32.mrf.mxu0
        %v800 = vadd.f32 %v380, %v799
        %v801 = vpop.f32.mrf.mxu0
        %v802 = vadd.f32 %v385, %v801
        %v803 = vpop.f32.mrf.mxu0
        %v804 = vadd.f32 %v385, %v803
        %805 = vmatprep.mubr.bf16.mxu0 0
        %806 = vmatmul.mubr.bf16.gmra.mxu0 %v534
        %v807 = vpop.f32.mrf.mxu0
        %v808 = vadd.f32 %v390, %v807
        %v809 = vpop.f32.mrf.mxu0
        %v810 = vadd.f32 %v390, %v809
        %v811 = vpop.f32.mrf.mxu0
        %v812 = vadd.f32 %v395, %v811
        %v813 = vpop.f32.mrf.mxu0
        %v814 = vadd.f32 %v395, %v813
        %815 = vmatprep.mubr.bf16.mxu0 0
        %816 = vmatmul.mubr.bf16.gmra.mxu0 %v537
        %v817 = vpop.f32.mrf.mxu0
        %v818 = vadd.f32 %v400, %v817
        %v819 = vpop.f32.mrf.mxu0
        %v820 = vadd.f32 %v400, %v819
        %v821 = vpop.f32.mrf.mxu0
        %v822 = vadd.f32 %v405, %v821
        %v823 = vpop.f32.mrf.mxu0
        %v824 = vadd.f32 %v405, %v823
        %825 = vmatprep.mubr.bf16.mxu0 0
        %826 = vmatmul.mubr.bf16.gmra.mxu0 %v540
        %v827 = vpop.f32.mrf.mxu0
        %v828 = vadd.f32 %v410, %v827
        %v829 = vpop.f32.mrf.mxu0
        %v830 = vadd.f32 %v410, %v829
        %v831 = vpop.f32.mrf.mxu0
        %v832 = vadd.f32 %v415, %v831
        %v833 = vpop.f32.mrf.mxu0
        %v834 = vadd.f32 %v415, %v833
        %835 = vmatprep.mubr.bf16.mxu0 0
        %836 = vmatmul.mubr.bf16.gmra.mxu0 %v543
        %v837 = vpop.f32.mrf.mxu0
        %v838 = vadd.f32 %v420, %v837
        %v839 = vpop.f32.mrf.mxu0
        %v840 = vadd.f32 %v420, %v839
        %v841 = vpop.f32.mrf.mxu0
        %v842 = vadd.f32 %v425, %v841
        %v843 = vpop.f32.mrf.mxu0
        %v844 = vadd.f32 %v425, %v843
        %845 = vmatprep.mubr.bf16.mxu0 0
        %846 = vmatmul.mubr.bf16.gmra.mxu0 %v546
        %v847 = vpop.f32.mrf.mxu0
        %v848 = vadd.f32 %v430, %v847
        %v849 = vpop.f32.mrf.mxu0
        %v850 = vadd.f32 %v430, %v849
        %v851 = vpop.f32.mrf.mxu0
        %v852 = vadd.f32 %v435, %v851
        %v853 = vpop.f32.mrf.mxu0
        %v854 = vadd.f32 %v435, %v853
        %855 = vmatprep.mubr.bf16.mxu0 0
        %856 = vmatmul.mubr.bf16.gmra.mxu0 %v549
        %v857 = vpop.f32.mrf.mxu0
        %v858 = vadd.f32 %v440, %v857
        %v859 = vpop.f32.mrf.mxu0
        %v860 = vadd.f32 %v440, %v859
        %v861 = vpop.f32.mrf.mxu0
        %v862 = vadd.f32 %v445, %v861
        %v863 = vpop.f32.mrf.mxu0
        %v864 = vadd.f32 %v445, %v863
        %865 = vmatprep.mubr.bf16.mxu0 0
        %866 = vmatmul.mubr.bf16.gmra.mxu0 %v552
        %v867 = vpop.f32.mrf.mxu0
        %v868 = vadd.f32 %v450, %v867
        %v869 = vpop.f32.mrf.mxu0
        %v870 = vadd.f32 %v450, %v869
        %v871 = vpop.f32.mrf.mxu0
        %v872 = vadd.f32 %v455, %v871
        %v873 = vpop.f32.mrf.mxu0
        %v874 = vadd.f32 %v455, %v873
        %875 = vdwg.mxu0
        %v876 = vmax.f32 %v605, 0.0
        %v877 = vmax.f32 %v607, 0.0
        %v878 = vmax.f32 %v758, 0.0
        %v879 = vmax.f32 %v760, 0.0
        %v880 = vmax.f32 %v609, 0.0
        %v881 = vmax.f32 %v611, 0.0
        %v882 = vmax.f32 %v762, 0.0
        %v883 = vmax.f32 %v764, 0.0
        %v884 = vmax.f32 %v615, 0.0
        %v885 = vmax.f32 %v617, 0.0
        %v886 = vmax.f32 %v768, 0.0
        %v887 = vmax.f32 %v770, 0.0
        %v888 = vmax.f32 %v619, 0.0
        %v889 = vmax.f32 %v621, 0.0
        %v890 = vmax.f32 %v772, 0.0
        %v891 = vmax.f32 %v774, 0.0
        %v892 = vmax.f32 %v625, 0.0
        %v893 = vmax.f32 %v627, 0.0
        %v894 = vmax.f32 %v778, 0.0
        %v895 = vmax.f32 %v780, 0.0
        %v896 = vmax.f32 %v629, 0.0
        %v897 = vmax.f32 %v631, 0.0
        %v898 = vmax.f32 %v782, 0.0
        %v899 = vmax.f32 %v784, 0.0
        %v900 = vmax.f32 %v635, 0.0
        %v901 = vmax.f32 %v637, 0.0
        %v902 = vmax.f32 %v788, 0.0
        %v903 = vmax.f32 %v790, 0.0
        %v904 = vmax.f32 %v639, 0.0
        %v905 = vmax.f32 %v641, 0.0
        %v906 = vmax.f32 %v792, 0.0
        %v907 = vmax.f32 %v794, 0.0
        %v908 = vmax.f32 %v645, 0.0
        %v909 = vmax.f32 %v647, 0.0
        %v910 = vmax.f32 %v798, 0.0
        %v911 = vmax.f32 %v800, 0.0
        %v912 = vmax.f32 %v649, 0.0
        %v913 = vmax.f32 %v651, 0.0
        %v914 = vmax.f32 %v802, 0.0
        %v915 = vmax.f32 %v804, 0.0
        %v916 = vmax.f32 %v655, 0.0
        %v917 = vmax.f32 %v657, 0.0
        %v918 = vmax.f32 %v808, 0.0
        %v919 = vmax.f32 %v810, 0.0
        %v920 = vmax.f32 %v659, 0.0
        %v921 = vmax.f32 %v661, 0.0
        %v922 = vmax.f32 %v812, 0.0
        %v923 = vmax.f32 %v814, 0.0
        %v924 = vmax.f32 %v665, 0.0
        %v925 = vmax.f32 %v667, 0.0
        %v926 = vmax.f32 %v818, 0.0
        %v927 = vmax.f32 %v820, 0.0
        %v928 = vmax.f32 %v669, 0.0
        %v929 = vmax.f32 %v671, 0.0
        %v930 = vmax.f32 %v822, 0.0
        %v931 = vmax.f32 %v824, 0.0
        %v932 = vmax.f32 %v675, 0.0
        %v933 = vmax.f32 %v677, 0.0
        %v934 = vmax.f32 %v828, 0.0
        %v935 = vmax.f32 %v830, 0.0
        %v936 = vmax.f32 %v679, 0.0
        %v937 = vmax.f32 %v681, 0.0
        %v938 = vmax.f32 %v832, 0.0
        %v939 = vmax.f32 %v834, 0.0
        %v940 = vmax.f32 %v685, 0.0
        %v941 = vmax.f32 %v687, 0.0
        %v942 = vmax.f32 %v838, 0.0
        %v943 = vmax.f32 %v840, 0.0
        %v944 = vmax.f32 %v689, 0.0
        %v945 = vmax.f32 %v691, 0.0
        %v946 = vmax.f32 %v842, 0.0
        %v947 = vmax.f32 %v844, 0.0
        %v948 = vmax.f32 %v695, 0.0
        %v949 = vmax.f32 %v697, 0.0
        %v950 = vmax.f32 %v848, 0.0
        %v951 = vmax.f32 %v850, 0.0
        %v952 = vmax.f32 %v699, 0.0
        %v953 = vmax.f32 %v701, 0.0
        %v954 = vmax.f32 %v852, 0.0
        %v955 = vmax.f32 %v854, 0.0
        %v956 = vmax.f32 %v705, 0.0
        %v957 = vmax.f32 %v707, 0.0
        %v958 = vmax.f32 %v858, 0.0
        %v959 = vmax.f32 %v860, 0.0
        %v960 = vmax.f32 %v709, 0.0
        %v961 = vmax.f32 %v711, 0.0
        %v962 = vmax.f32 %v862, 0.0
        %v963 = vmax.f32 %v864, 0.0
        %v964 = vmax.f32 %v715, 0.0
        %v965 = vmax.f32 %v717, 0.0
        %v966 = vmax.f32 %v868, 0.0
        %v967 = vmax.f32 %v870, 0.0
        %v968 = vmax.f32 %v719, 0.0
        %v969 = vmax.f32 %v721, 0.0
        %v970 = vmax.f32 %v872, 0.0
        %v971 = vmax.f32 %v874, 0.0
        %v972 = vld [vmem:[%s3] sm:$0xff]
        %v973 = vld [vmem:[%s3 + $0x8] sm:$0xff]
        %v974 = vld [vmem:[%s3 + $0x10] sm:$0xff]
        %v975 = vld [vmem:[%s3 + $0x18] sm:$0xff]
        %v976 = vld [vmem:[%s3 + $0x20] sm:$0xff]
        %v977 = vld [vmem:[%s3 + $0x28] sm:$0xff]
        %v978 = vld [vmem:[%s3 + $0x30] sm:$0xff]
        %v979 = vld [vmem:[%s3 + $0x38] sm:$0xff]
        %v980 = vld [vmem:[%s3 + $0x40] sm:$0xff]
        %v981 = vld [vmem:[%s3 + $0x48] sm:$0xff]
        %v982 = vld [vmem:[%s3 + $0x50] sm:$0xff]
        %v983 = vld [vmem:[%s3 + $0x58] sm:$0xff]
        %v984 = vld [vmem:[%s3 + $0x60] sm:$0xff]
        %v985 = vld [vmem:[%s3 + $0x68] sm:$0xff]
        %v986 = vld [vmem:[%s3 + $0x70] sm:$0xff]
        %v987 = vld [vmem:[%s3 + $0x78] sm:$0xff]
        %v988 = vld [vmem:[%s3 + $0x80] sm:$0xff]
        %v989 = vld [vmem:[%s3 + $0x88] sm:$0xff]
        %v990 = vld [vmem:[%s3 + $0x90] sm:$0xff]
        %v991 = vld [vmem:[%s3 + $0x98] sm:$0xff]
        %v992 = vld [vmem:[%s3 + $0xa0] sm:$0xff]
        %v993 = vld [vmem:[%s3 + $0xa8] sm:$0xff]
        %v994 = vld [vmem:[%s3 + $0xb0] sm:$0xff]
        %v995 = vld [vmem:[%s3 + $0xb8] sm:$0xff]
        %v996 = vpack.c.bf16 %v880, %v876
        %v997 = vpack.c.bf16 %v881, %v877
        %v998 = vpack.c.bf16 %v882, %v878
        %v999 = vpack.c.bf16 %v883, %v879
        %v1000 = vpack.c.bf16 %v888, %v884
        %v1001 = vpack.c.bf16 %v889, %v885
        %v1002 = vpack.c.bf16 %v890, %v886
        %v1003 = vpack.c.bf16 %v891, %v887
        %v1004 = vpack.c.bf16 %v896, %v892
        %v1005 = vpack.c.bf16 %v897, %v893
        %v1006 = vpack.c.bf16 %v898, %v894
        %v1007 = vpack.c.bf16 %v899, %v895
        %v1008 = vpack.c.bf16 %v904, %v900
        %v1009 = vpack.c.bf16 %v905, %v901
        %v1010 = vpack.c.bf16 %v906, %v902
        %v1011 = vpack.c.bf16 %v907, %v903
        %v1012 = vpack.c.bf16 %v912, %v908
        %v1013 = vpack.c.bf16 %v913, %v909
        %v1014 = vpack.c.bf16 %v914, %v910
        %v1015 = vpack.c.bf16 %v915, %v911
        %v1016 = vpack.c.bf16 %v920, %v916
        %v1017 = vpack.c.bf16 %v921, %v917
        %v1018 = vpack.c.bf16 %v922, %v918
        %v1019 = vpack.c.bf16 %v923, %v919
        %v1020 = vpack.c.bf16 %v928, %v924
        %v1021 = vpack.c.bf16 %v929, %v925
        %v1022 = vpack.c.bf16 %v930, %v926
        %v1023 = vpack.c.bf16 %v931, %v927
        %v1024 = vpack.c.bf16 %v936, %v932
        %v1025 = vpack.c.bf16 %v937, %v933
        %v1026 = vpack.c.bf16 %v938, %v934
        %v1027 = vpack.c.bf16 %v939, %v935
        %v1028 = vpack.c.bf16 %v944, %v940
        %v1029 = vpack.c.bf16 %v945, %v941
        %v1030 = vpack.c.bf16 %v946, %v942
        %v1031 = vpack.c.bf16 %v947, %v943
        %v1032 = vpack.c.bf16 %v952, %v948
        %v1033 = vpack.c.bf16 %v953, %v949
        %v1034 = vpack.c.bf16 %v954, %v950
        %v1035 = vpack.c.bf16 %v955, %v951
        %v1036 = vpack.c.bf16 %v960, %v956
        %v1037 = vpack.c.bf16 %v961, %v957
        %v1038 = vpack.c.bf16 %v962, %v958
        %v1039 = vpack.c.bf16 %v963, %v959
        %v1040 = vpack.c.bf16 %v968, %v964
        %v1041 = vpack.c.bf16 %v969, %v965
        %v1042 = vpack.c.bf16 %v970, %v966
        %v1043 = vpack.c.bf16 %v971, %v967
        %v1044 = vld [vmem:[%s4] sm:$0xff]
        %v1045 = vld [vmem:[%s4 + $0x8] sm:$0xff]
        %v1046 = vld [vmem:[%s4 + $0x10] sm:$0xff]
        %v1047 = vld [vmem:[%s4 + $0x18] sm:$0xff]
        %v1048 = vld [vmem:[%s4 + $0x20] sm:$0xff]
        %v1049 = vld [vmem:[%s4 + $0x28] sm:$0xff]
        %v1050 = vld [vmem:[%s4 + $0x30] sm:$0xff]
        %v1051 = vld [vmem:[%s4 + $0x38] sm:$0xff]
        %v1052 = vld [vmem:[%s4 + $0x40] sm:$0xff]
        %v1053 = vld [vmem:[%s4 + $0x48] sm:$0xff]
        %v1054 = vld [vmem:[%s4 + $0x50] sm:$0xff]
        %v1055 = vld [vmem:[%s4 + $0x58] sm:$0xff]
        %v1056 = vld [vmem:[%s4 + $0x60] sm:$0xff]
        %v1057 = vld [vmem:[%s4 + $0x68] sm:$0xff]
        %v1058 = vld [vmem:[%s4 + $0x70] sm:$0xff]
        %v1059 = vld [vmem:[%s4 + $0x78] sm:$0xff]
        %v1060 = vld [vmem:[%s4 + $0x80] sm:$0xff]
        %v1061 = vld [vmem:[%s4 + $0x88] sm:$0xff]
        %v1062 = vld [vmem:[%s4 + $0x90] sm:$0xff]
        %v1063 = vld [vmem:[%s4 + $0x98] sm:$0xff]
        %v1064 = vld [vmem:[%s4 + $0xa0] sm:$0xff]
        %v1065 = vld [vmem:[%s4 + $0xa8] sm:$0xff]
        %v1066 = vld [vmem:[%s4 + $0xb0] sm:$0xff]
        %v1067 = vld [vmem:[%s4 + $0xb8] sm:$0xff]
        %1069 = vset.pattern.permute.xlu0 0
        %1070 = vperm.xlu0 %1069, %v1044
        %v1071 = vpop.permute.xlu0 %1070
        %1074 = vset.pattern.permute.xlu0 0
        %1075 = vperm.xlu0 %1074, %v1045
        %v1076 = vpop.permute.xlu0 %1075
        %1079 = vset.pattern.permute.xlu0 0
        %1080 = vperm.xlu0 %1079, %v1046
        %v1081 = vpop.permute.xlu0 %1080
        %1084 = vset.pattern.permute.xlu0 0
        %1085 = vperm.xlu0 %1084, %v1047
        %v1086 = vpop.permute.xlu0 %1085
        %1089 = vset.pattern.permute.xlu0 0
        %1090 = vperm.xlu0 %1089, %v1048
        %v1091 = vpop.permute.xlu0 %1090
        %1094 = vset.pattern.permute.xlu0 0
        %1095 = vperm.xlu0 %1094, %v1049
        %v1096 = vpop.permute.xlu0 %1095
        %1099 = vset.pattern.permute.xlu0 0
        %1100 = vperm.xlu0 %1099, %v1050
        %v1101 = vpop.permute.xlu0 %1100
        %1104 = vset.pattern.permute.xlu0 0
        %1105 = vperm.xlu0 %1104, %v1051
        %v1106 = vpop.permute.xlu0 %1105
        %1109 = vset.pattern.permute.xlu0 0
        %1110 = vperm.xlu0 %1109, %v1052
        %v1111 = vpop.permute.xlu0 %1110
        %1114 = vset.pattern.permute.xlu0 0
        %1115 = vperm.xlu0 %1114, %v1053
        %v1116 = vpop.permute.xlu0 %1115
        %1119 = vset.pattern.permute.xlu0 0
        %1120 = vperm.xlu0 %1119, %v1054
        %v1121 = vpop.permute.xlu0 %1120
        %1124 = vset.pattern.permute.xlu0 0
        %1125 = vperm.xlu0 %1124, %v1055
        %v1126 = vpop.permute.xlu0 %1125
        %1129 = vset.pattern.permute.xlu0 0
        %1130 = vperm.xlu0 %1129, %v1056
        %v1131 = vpop.permute.xlu0 %1130
        %1134 = vset.pattern.permute.xlu0 0
        %1135 = vperm.xlu0 %1134, %v1057
        %v1136 = vpop.permute.xlu0 %1135
        %1139 = vset.pattern.permute.xlu0 0
        %1140 = vperm.xlu0 %1139, %v1058
        %v1141 = vpop.permute.xlu0 %1140
        %1144 = vset.pattern.permute.xlu0 0
        %1145 = vperm.xlu0 %1144, %v1059
        %v1146 = vpop.permute.xlu0 %1145
        %1149 = vset.pattern.permute.xlu0 0
        %1150 = vperm.xlu0 %1149, %v1060
        %v1151 = vpop.permute.xlu0 %1150
        %1154 = vset.pattern.permute.xlu0 0
        %1155 = vperm.xlu0 %1154, %v1061
        %v1156 = vpop.permute.xlu0 %1155
        %1159 = vset.pattern.permute.xlu0 0
        %1160 = vperm.xlu0 %1159, %v1062
        %v1161 = vpop.permute.xlu0 %1160
        %1164 = vset.pattern.permute.xlu0 0
        %1165 = vperm.xlu0 %1164, %v1063
        %v1166 = vpop.permute.xlu0 %1165
        %1169 = vset.pattern.permute.xlu0 0
        %1170 = vperm.xlu0 %1169, %v1064
        %v1171 = vpop.permute.xlu0 %1170
        %1174 = vset.pattern.permute.xlu0 0
        %1175 = vperm.xlu0 %1174, %v1065
        %v1176 = vpop.permute.xlu0 %1175
        %1179 = vset.pattern.permute.xlu0 0
        %1180 = vperm.xlu0 %1179, %v1066
        %v1181 = vpop.permute.xlu0 %1180
        %1184 = vset.pattern.permute.xlu0 0
        %1185 = vperm.xlu0 %1184, %v1067
        %v1186 = vpop.permute.xlu0 %1185
        %v1212 = vunpack.c.l.b16 %v972
        %v1213 = vunpack.c.h.b16 %v972
        %v1214 = vunpack.c.l.b16 %v973
        %v1215 = vunpack.c.h.b16 %v973
        %v1216 = vunpack.c.l.b16 %v974
        %v1217 = vunpack.c.h.b16 %v974
        %v1218 = vunpack.c.l.b16 %v975
        %v1219 = vunpack.c.h.b16 %v975
        %v1220 = vunpack.c.l.b16 %v976
        %v1221 = vunpack.c.h.b16 %v976
        %v1222 = vunpack.c.l.b16 %v977
        %v1223 = vunpack.c.h.b16 %v977
        %v1224 = vunpack.c.l.b16 %v978
        %v1225 = vunpack.c.h.b16 %v978
        %v1226 = vunpack.c.l.b16 %v979
        %v1227 = vunpack.c.h.b16 %v979
        %v1228 = vunpack.c.l.b16 %v980
        %v1229 = vunpack.c.h.b16 %v980
        %v1230 = vunpack.c.l.b16 %v981
        %v1231 = vunpack.c.h.b16 %v981
        %v1232 = vunpack.c.l.b16 %v982
        %v1233 = vunpack.c.h.b16 %v982
        %v1234 = vunpack.c.l.b16 %v983
        %v1235 = vunpack.c.h.b16 %v983
        %v1236 = vunpack.c.l.b16 %v984
        %v1237 = vunpack.c.h.b16 %v984
        %v1238 = vunpack.c.l.b16 %v985
        %v1239 = vunpack.c.h.b16 %v985
        %v1240 = vunpack.c.l.b16 %v986
        %v1241 = vunpack.c.h.b16 %v986
        %v1242 = vunpack.c.l.b16 %v987
        %v1243 = vunpack.c.h.b16 %v987
        %v1244 = vunpack.c.l.b16 %v988
        %v1245 = vunpack.c.h.b16 %v988
        %v1246 = vunpack.c.l.b16 %v989
        %v1247 = vunpack.c.h.b16 %v989
        %v1248 = vunpack.c.l.b16 %v990
        %v1249 = vunpack.c.h.b16 %v990
        %v1250 = vunpack.c.l.b16 %v991
        %v1251 = vunpack.c.h.b16 %v991
        %v1252 = vunpack.c.l.b16 %v992
        %v1253 = vunpack.c.h.b16 %v992
        %v1254 = vunpack.c.l.b16 %v993
        %v1255 = vunpack.c.h.b16 %v993
        %v1256 = vunpack.c.l.b16 %v994
        %v1257 = vunpack.c.h.b16 %v994
        %v1258 = vunpack.c.l.b16 %v995
        %v1259 = vunpack.c.h.b16 %v995
        %v1260 = vpack.c.b16 %v1214, %v1212
        %v1261 = vpack.c.b16 %v1215, %v1213
        %v1262 = vpack.c.b16 %v1218, %v1216
        %v1263 = vpack.c.b16 %v1219, %v1217
        %v1264 = vpack.c.b16 %v1222, %v1220
        %v1265 = vpack.c.b16 %v1223, %v1221
        %v1266 = vpack.c.b16 %v1226, %v1224
        %v1267 = vpack.c.b16 %v1227, %v1225
        %v1268 = vpack.c.b16 %v1230, %v1228
        %v1269 = vpack.c.b16 %v1231, %v1229
        %v1270 = vpack.c.b16 %v1234, %v1232
        %v1271 = vpack.c.b16 %v1235, %v1233
        %v1272 = vpack.c.b16 %v1238, %v1236
        %v1273 = vpack.c.b16 %v1239, %v1237
        %v1274 = vpack.c.b16 %v1242, %v1240
        %v1275 = vpack.c.b16 %v1243, %v1241
        %v1276 = vpack.c.b16 %v1246, %v1244
        %v1277 = vpack.c.b16 %v1247, %v1245
        %v1278 = vpack.c.b16 %v1250, %v1248
        %v1279 = vpack.c.b16 %v1251, %v1249
        %v1280 = vpack.c.b16 %v1254, %v1252
        %v1281 = vpack.c.b16 %v1255, %v1253
        %v1282 = vpack.c.b16 %v1258, %v1256
        %v1283 = vpack.c.b16 %v1259, %v1257
        %vm1296 = vcmask 523264
        %v1298 = vsel %vm1296, %v1261, 0
        %v1301 = vsel %vm1296, %v1263, 0
        %v1304 = vsel %vm1296, %v1265, 0
        %v1307 = vsel %vm1296, %v1267, 0
        %v1310 = vsel %vm1296, %v1269, 0
        %v1313 = vsel %vm1296, %v1271, 0
        %v1316 = vsel %vm1296, %v1273, 0
        %v1319 = vsel %vm1296, %v1275, 0
        %v1322 = vsel %vm1296, %v1277, 0
        %v1325 = vsel %vm1296, %v1279, 0
        %v1328 = vsel %vm1296, %v1281, 0
        %v1331 = vsel %vm1296, %v1283, 0
        %1333 = vmatprep.subr.bf16.mxu0 %v1025
        %1334 = vmatpush1.bf16.msra.mxu0 %v1024
        %1335 = vmatprep.subr.bf16.mxu0 %v1021
        %1336 = vmatpush1.bf16.msra.mxu0 %v1020
        %1337 = vmatprep.subr.bf16.mxu0 %v1017
        %1338 = vmatpush1.bf16.msra.mxu0 %v1016
        %1339 = vmatprep.subr.bf16.mxu0 %v1013
        %1340 = vmatpush1.bf16.msra.mxu0 %v1012
        %1341 = vmatprep.subr.bf16.mxu0 %v1009
        %1342 = vmatpush1.bf16.msra.mxu0 %v1008
        %1343 = vmatprep.subr.bf16.mxu0 %v1005
        %1344 = vmatpush1.bf16.msra.mxu0 %v1004
        %1345 = vmatprep.subr.bf16.mxu0 %v1001
        %1346 = vmatpush1.bf16.msra.mxu0 %v1000
        %1347 = vmatprep.subr.bf16.mxu0 %v997
        %1348 = vmatpush1.bf16.msra.mxu0 %v996
        %1349 = vmatprep.subr.bf16.mxu0 0
        %1350 = vmatpush2.bf16.msra.mxu0 0
        %1351 = vmatprep.subr.bf16.mxu0 0
        %1352 = vmatpush2.bf16.msra.mxu0 0
        %1353 = vmatprep.subr.bf16.mxu0 0
        %1354 = vmatpush2.bf16.msra.mxu0 0
        %1355 = vmatprep.subr.bf16.mxu0 0
        %1356 = vmatpush2.bf16.msra.mxu0 0
        %1357 = vmatprep.subr.bf16.mxu0 %v1041
        %1358 = vmatpush2.bf16.msra.mxu0 %v1040
        %1359 = vmatprep.subr.bf16.mxu0 %v1037
        %1360 = vmatpush2.bf16.msra.mxu0 %v1036
        %1361 = vmatprep.subr.bf16.mxu0 %v1033
        %1362 = vmatpush2.bf16.msra.mxu0 %v1032
        %1363 = vmatprep.subr.bf16.mxu0 %v1029
        %1364 = vmatpush2.bf16.msra.mxu0 %v1028
        %1365 = vmatprep.mubr.bf16.mxu0 %v1298
        %1366 = vmatmul.mubr.bf16.gmra.mxu0 %v1260
        %v1367 = vpop.f32.mrf.mxu0
        %v1368 = vadd.f32 %v1071, %v1367
        %v1369 = vpop.f32.mrf.mxu0
        %v1370 = vadd.f32 %v1071, %v1369
        %v1371 = vpop.f32.mrf.mxu0
        %v1372 = vadd.f32 %v1076, %v1371
        %v1373 = vpop.f32.mrf.mxu0
        %v1374 = vadd.f32 %v1076, %v1373
        %1375 = vmatprep.mubr.bf16.mxu0 %v1301
        %1376 = vmatmul.mubr.bf16.gmra.mxu0 %v1262
        %v1377 = vpop.f32.mrf.mxu0
        %v1378 = vadd.f32 %v1081, %v1377
        %v1379 = vpop.f32.mrf.mxu0
        %v1380 = vadd.f32 %v1081, %v1379
        %v1381 = vpop.f32.mrf.mxu0
        %v1382 = vadd.f32 %v1086, %v1381
        %v1383 = vpop.f32.mrf.mxu0
        %v1384 = vadd.f32 %v1086, %v1383
        %1385 = vmatprep.mubr.bf16.mxu0 %v1304
        %1386 = vmatmul.mubr.bf16.gmra.mxu0 %v1264
        %v1387 = vpop.f32.mrf.mxu0
        %v1388 = vadd.f32 %v1091, %v1387
        %v1389 = vpop.f32.mrf.mxu0
        %v1390 = vadd.f32 %v1091, %v1389
        %v1391 = vpop.f32.mrf.mxu0
        %v1392 = vadd.f32 %v1096, %v1391
        %v1393 = vpop.f32.mrf.mxu0
        %v1394 = vadd.f32 %v1096, %v1393
        %1395 = vmatprep.mubr.bf16.mxu0 %v1307
        %1396 = vmatmul.mubr.bf16.gmra.mxu0 %v1266
        %v1397 = vpop.f32.mrf.mxu0
        %v1398 = vadd.f32 %v1101, %v1397
        %v1399 = vpop.f32.mrf.mxu0
        %v1400 = vadd.f32 %v1101, %v1399
        %v1401 = vpop.f32.mrf.mxu0
        %v1402 = vadd.f32 %v1106, %v1401
        %v1403 = vpop.f32.mrf.mxu0
        %v1404 = vadd.f32 %v1106, %v1403
        %1405 = vmatprep.mubr.bf16.mxu0 %v1310
        %1406 = vmatmul.mubr.bf16.gmra.mxu0 %v1268
        %v1407 = vpop.f32.mrf.mxu0
        %v1408 = vadd.f32 %v1111, %v1407
        %v1409 = vpop.f32.mrf.mxu0
        %v1410 = vadd.f32 %v1111, %v1409
        %v1411 = vpop.f32.mrf.mxu0
        %v1412 = vadd.f32 %v1116, %v1411
        %v1413 = vpop.f32.mrf.mxu0
        %v1414 = vadd.f32 %v1116, %v1413
        %1415 = vmatprep.mubr.bf16.mxu0 %v1313
        %1416 = vmatmul.mubr.bf16.gmra.mxu0 %v1270
        %v1417 = vpop.f32.mrf.mxu0
        %v1418 = vadd.f32 %v1121, %v1417
        %v1419 = vpop.f32.mrf.mxu0
        %v1420 = vadd.f32 %v1121, %v1419
        %v1421 = vpop.f32.mrf.mxu0
        %v1422 = vadd.f32 %v1126, %v1421
        %v1423 = vpop.f32.mrf.mxu0
        %v1424 = vadd.f32 %v1126, %v1423
        %1425 = vmatprep.mubr.bf16.mxu0 %v1316
        %1426 = vmatmul.mubr.bf16.gmra.mxu0 %v1272
        %v1427 = vpop.f32.mrf.mxu0
        %v1428 = vadd.f32 %v1131, %v1427
        %v1429 = vpop.f32.mrf.mxu0
        %v1430 = vadd.f32 %v1131, %v1429
        %v1431 = vpop.f32.mrf.mxu0
        %v1432 = vadd.f32 %v1136, %v1431
        %v1433 = vpop.f32.mrf.mxu0
        %v1434 = vadd.f32 %v1136, %v1433
        %1435 = vmatprep.mubr.bf16.mxu0 %v1319
        %1436 = vmatmul.mubr.bf16.gmra.mxu0 %v1274
        %v1437 = vpop.f32.mrf.mxu0
        %v1438 = vadd.f32 %v1141, %v1437
        %v1439 = vpop.f32.mrf.mxu0
        %v1440 = vadd.f32 %v1141, %v1439
        %v1441 = vpop.f32.mrf.mxu0
        %v1442 = vadd.f32 %v1146, %v1441
        %v1443 = vpop.f32.mrf.mxu0
        %v1444 = vadd.f32 %v1146, %v1443
        %1445 = vmatprep.mubr.bf16.mxu0 %v1322
        %1446 = vmatmul.mubr.bf16.gmra.mxu0 %v1276
        %v1447 = vpop.f32.mrf.mxu0
        %v1448 = vadd.f32 %v1151, %v1447
        %v1449 = vpop.f32.mrf.mxu0
        %v1450 = vadd.f32 %v1151, %v1449
        %v1451 = vpop.f32.mrf.mxu0
        %v1452 = vadd.f32 %v1156, %v1451
        %v1453 = vpop.f32.mrf.mxu0
        %v1454 = vadd.f32 %v1156, %v1453
        %1455 = vmatprep.mubr.bf16.mxu0 %v1325
        %1456 = vmatmul.mubr.bf16.gmra.mxu0 %v1278
        %v1457 = vpop.f32.mrf.mxu0
        %v1458 = vadd.f32 %v1161, %v1457
        %v1459 = vpop.f32.mrf.mxu0
        %v1460 = vadd.f32 %v1161, %v1459
        %v1461 = vpop.f32.mrf.mxu0
        %v1462 = vadd.f32 %v1166, %v1461
        %v1463 = vpop.f32.mrf.mxu0
        %v1464 = vadd.f32 %v1166, %v1463
        %1465 = vmatprep.mubr.bf16.mxu0 %v1328
        %1466 = vmatmul.mubr.bf16.gmra.mxu0 %v1280
        %v1467 = vpop.f32.mrf.mxu0
        %v1468 = vadd.f32 %v1171, %v1467
        %v1469 = vpop.f32.mrf.mxu0
        %v1470 = vadd.f32 %v1171, %v1469
        %v1471 = vpop.f32.mrf.mxu0
        %v1472 = vadd.f32 %v1176, %v1471
        %v1473 = vpop.f32.mrf.mxu0
        %v1474 = vadd.f32 %v1176, %v1473
        %1475 = vmatprep.mubr.bf16.mxu0 %v1331
        %1476 = vmatmul.mubr.bf16.gmra.mxu0 %v1282
        %v1477 = vpop.f32.mrf.mxu0
        %v1478 = vadd.f32 %v1181, %v1477
        %v1479 = vpop.f32.mrf.mxu0
        %v1480 = vadd.f32 %v1181, %v1479
        %v1481 = vpop.f32.mrf.mxu0
        %v1482 = vadd.f32 %v1186, %v1481
        %v1483 = vpop.f32.mrf.mxu0
        %v1484 = vadd.f32 %v1186, %v1483
        %1485 = vdwg.mxu0
        %1486 = vmatprep.subr.bf16.mxu0 %v1027
        %1487 = vmatpush1.bf16.msra.mxu0 %v1026
        %1488 = vmatprep.subr.bf16.mxu0 %v1023
        %1489 = vmatpush1.bf16.msra.mxu0 %v1022
        %1490 = vmatprep.subr.bf16.mxu0 %v1019
        %1491 = vmatpush1.bf16.msra.mxu0 %v1018
        %1492 = vmatprep.subr.bf16.mxu0 %v1015
        %1493 = vmatpush1.bf16.msra.mxu0 %v1014
        %1494 = vmatprep.subr.bf16.mxu0 %v1011
        %1495 = vmatpush1.bf16.msra.mxu0 %v1010
        %1496 = vmatprep.subr.bf16.mxu0 %v1007
        %1497 = vmatpush1.bf16.msra.mxu0 %v1006
        %1498 = vmatprep.subr.bf16.mxu0 %v1003
        %1499 = vmatpush1.bf16.msra.mxu0 %v1002
        %1500 = vmatprep.subr.bf16.mxu0 %v999
        %1501 = vmatpush1.bf16.msra.mxu0 %v998
        %1502 = vmatprep.subr.bf16.mxu0 0
        %1503 = vmatpush2.bf16.msra.mxu0 0
        %1504 = vmatprep.subr.bf16.mxu0 0
        %1505 = vmatpush2.bf16.msra.mxu0 0
        %1506 = vmatprep.subr.bf16.mxu0 0
        %1507 = vmatpush2.bf16.msra.mxu0 0
        %1508 = vmatprep.subr.bf16.mxu0 0
        %1509 = vmatpush2.bf16.msra.mxu0 0
        %1510 = vmatprep.subr.bf16.mxu0 %v1043
        %1511 = vmatpush2.bf16.msra.mxu0 %v1042
        %1512 = vmatprep.subr.bf16.mxu0 %v1039
        %1513 = vmatpush2.bf16.msra.mxu0 %v1038
        %1514 = vmatprep.subr.bf16.mxu0 %v1035
        %1515 = vmatpush2.bf16.msra.mxu0 %v1034
        %1516 = vmatprep.subr.bf16.mxu0 %v1031
        %1517 = vmatpush2.bf16.msra.mxu0 %v1030
        %1518 = vmatprep.mubr.bf16.mxu0 %v1298
        %1519 = vmatmul.mubr.bf16.gmra.mxu0 %v1260
        %v1520 = vpop.f32.mrf.mxu0
        %v1521 = vadd.f32 %v1071, %v1520
        %v1522 = vpop.f32.mrf.mxu0
        %v1523 = vadd.f32 %v1071, %v1522
        %v1524 = vpop.f32.mrf.mxu0
        %v1525 = vadd.f32 %v1076, %v1524
        %v1526 = vpop.f32.mrf.mxu0
        %v1527 = vadd.f32 %v1076, %v1526
        %1528 = vmatprep.mubr.bf16.mxu0 %v1301
        %1529 = vmatmul.mubr.bf16.gmra.mxu0 %v1262
        %v1530 = vpop.f32.mrf.mxu0
        %v1531 = vadd.f32 %v1081, %v1530
        %v1532 = vpop.f32.mrf.mxu0
        %v1533 = vadd.f32 %v1081, %v1532
        %v1534 = vpop.f32.mrf.mxu0
        %v1535 = vadd.f32 %v1086, %v1534
        %v1536 = vpop.f32.mrf.mxu0
        %v1537 = vadd.f32 %v1086, %v1536
        %1538 = vmatprep.mubr.bf16.mxu0 %v1304
        %1539 = vmatmul.mubr.bf16.gmra.mxu0 %v1264
        %v1540 = vpop.f32.mrf.mxu0
        %v1541 = vadd.f32 %v1091, %v1540
        %v1542 = vpop.f32.mrf.mxu0
        %v1543 = vadd.f32 %v1091, %v1542
        %v1544 = vpop.f32.mrf.mxu0
        %v1545 = vadd.f32 %v1096, %v1544
        %v1546 = vpop.f32.mrf.mxu0
        %v1547 = vadd.f32 %v1096, %v1546
        %1548 = vmatprep.mubr.bf16.mxu0 %v1307
        %1549 = vmatmul.mubr.bf16.gmra.mxu0 %v1266
        %v1550 = vpop.f32.mrf.mxu0
        %v1551 = vadd.f32 %v1101, %v1550
        %v1552 = vpop.f32.mrf.mxu0
        %v1553 = vadd.f32 %v1101, %v1552
        %v1554 = vpop.f32.mrf.mxu0
        %v1555 = vadd.f32 %v1106, %v1554
        %v1556 = vpop.f32.mrf.mxu0
        %v1557 = vadd.f32 %v1106, %v1556
        %1558 = vmatprep.mubr.bf16.mxu0 %v1310
        %1559 = vmatmul.mubr.bf16.gmra.mxu0 %v1268
        %v1560 = vpop.f32.mrf.mxu0
        %v1561 = vadd.f32 %v1111, %v1560
        %v1562 = vpop.f32.mrf.mxu0
        %v1563 = vadd.f32 %v1111, %v1562
        %v1564 = vpop.f32.mrf.mxu0
        %v1565 = vadd.f32 %v1116, %v1564
        %v1566 = vpop.f32.mrf.mxu0
        %v1567 = vadd.f32 %v1116, %v1566
        %1568 = vmatprep.mubr.bf16.mxu0 %v1313
        %1569 = vmatmul.mubr.bf16.gmra.mxu0 %v1270
        %v1570 = vpop.f32.mrf.mxu0
        %v1571 = vadd.f32 %v1121, %v1570
        %v1572 = vpop.f32.mrf.mxu0
        %v1573 = vadd.f32 %v1121, %v1572
        %v1574 = vpop.f32.mrf.mxu0
        %v1575 = vadd.f32 %v1126, %v1574
        %v1576 = vpop.f32.mrf.mxu0
        %v1577 = vadd.f32 %v1126, %v1576
        %1578 = vmatprep.mubr.bf16.mxu0 %v1316
        %1579 = vmatmul.mubr.bf16.gmra.mxu0 %v1272
        %v1580 = vpop.f32.mrf.mxu0
        %v1581 = vadd.f32 %v1131, %v1580
        %v1582 = vpop.f32.mrf.mxu0
        %v1583 = vadd.f32 %v1131, %v1582
        %v1584 = vpop.f32.mrf.mxu0
        %v1585 = vadd.f32 %v1136, %v1584
        %v1586 = vpop.f32.mrf.mxu0
        %v1587 = vadd.f32 %v1136, %v1586
        %1588 = vmatprep.mubr.bf16.mxu0 %v1319
        %1589 = vmatmul.mubr.bf16.gmra.mxu0 %v1274
        %v1590 = vpop.f32.mrf.mxu0
        %v1591 = vadd.f32 %v1141, %v1590
        %v1592 = vpop.f32.mrf.mxu0
        %v1593 = vadd.f32 %v1141, %v1592
        %v1594 = vpop.f32.mrf.mxu0
        %v1595 = vadd.f32 %v1146, %v1594
        %v1596 = vpop.f32.mrf.mxu0
        %v1597 = vadd.f32 %v1146, %v1596
        %1598 = vmatprep.mubr.bf16.mxu0 %v1322
        %1599 = vmatmul.mubr.bf16.gmra.mxu0 %v1276
        %v1600 = vpop.f32.mrf.mxu0
        %v1601 = vadd.f32 %v1151, %v1600
        %v1602 = vpop.f32.mrf.mxu0
        %v1603 = vadd.f32 %v1151, %v1602
        %v1604 = vpop.f32.mrf.mxu0
        %v1605 = vadd.f32 %v1156, %v1604
        %v1606 = vpop.f32.mrf.mxu0
        %v1607 = vadd.f32 %v1156, %v1606
        %1608 = vmatprep.mubr.bf16.mxu0 %v1325
        %1609 = vmatmul.mubr.bf16.gmra.mxu0 %v1278
        %v1610 = vpop.f32.mrf.mxu0
        %v1611 = vadd.f32 %v1161, %v1610
        %v1612 = vpop.f32.mrf.mxu0
        %v1613 = vadd.f32 %v1161, %v1612
        %v1614 = vpop.f32.mrf.mxu0
        %v1615 = vadd.f32 %v1166, %v1614
        %v1616 = vpop.f32.mrf.mxu0
        %v1617 = vadd.f32 %v1166, %v1616
        %1618 = vmatprep.mubr.bf16.mxu0 %v1328
        %1619 = vmatmul.mubr.bf16.gmra.mxu0 %v1280
        %v1620 = vpop.f32.mrf.mxu0
        %v1621 = vadd.f32 %v1171, %v1620
        %v1622 = vpop.f32.mrf.mxu0
        %v1623 = vadd.f32 %v1171, %v1622
        %v1624 = vpop.f32.mrf.mxu0
        %v1625 = vadd.f32 %v1176, %v1624
        %v1626 = vpop.f32.mrf.mxu0
        %v1627 = vadd.f32 %v1176, %v1626
        %1628 = vmatprep.mubr.bf16.mxu0 %v1331
        %1629 = vmatmul.mubr.bf16.gmra.mxu0 %v1282
        %v1630 = vpop.f32.mrf.mxu0
        %v1631 = vadd.f32 %v1181, %v1630
        %v1632 = vpop.f32.mrf.mxu0
        %v1633 = vadd.f32 %v1181, %v1632
        %v1634 = vpop.f32.mrf.mxu0
        %v1635 = vadd.f32 %v1186, %v1634
        %v1636 = vpop.f32.mrf.mxu0
        %v1637 = vadd.f32 %v1186, %v1636
        %1638 = vdwg.mxu0
        %v1639 = vmax.f32 %v1368, 0.0
        %v1640 = vmax.f32 %v1370, 0.0
        %v1641 = vmax.f32 %v1521, 0.0
        %v1642 = vmax.f32 %v1523, 0.0
        %v1643 = vmax.f32 %v1372, 0.0
        %v1644 = vmax.f32 %v1374, 0.0
        %v1645 = vmax.f32 %v1525, 0.0
        %v1646 = vmax.f32 %v1527, 0.0
        %v1647 = vmax.f32 %v1378, 0.0
        %v1648 = vmax.f32 %v1380, 0.0
        %v1649 = vmax.f32 %v1531, 0.0
        %v1650 = vmax.f32 %v1533, 0.0
        %v1651 = vmax.f32 %v1382, 0.0
        %v1652 = vmax.f32 %v1384, 0.0
        %v1653 = vmax.f32 %v1535, 0.0
        %v1654 = vmax.f32 %v1537, 0.0
        %v1655 = vmax.f32 %v1388, 0.0
        %v1656 = vmax.f32 %v1390, 0.0
        %v1657 = vmax.f32 %v1541, 0.0
        %v1658 = vmax.f32 %v1543, 0.0
        %v1659 = vmax.f32 %v1392, 0.0
        %v1660 = vmax.f32 %v1394, 0.0
        %v1661 = vmax.f32 %v1545, 0.0
        %v1662 = vmax.f32 %v1547, 0.0
        %v1663 = vmax.f32 %v1398, 0.0
        %v1664 = vmax.f32 %v1400, 0.0
        %v1665 = vmax.f32 %v1551, 0.0
        %v1666 = vmax.f32 %v1553, 0.0
        %v1667 = vmax.f32 %v1402, 0.0
        %v1668 = vmax.f32 %v1404, 0.0
        %v1669 = vmax.f32 %v1555, 0.0
        %v1670 = vmax.f32 %v1557, 0.0
        %v1671 = vmax.f32 %v1408, 0.0
        %v1672 = vmax.f32 %v1410, 0.0
        %v1673 = vmax.f32 %v1561, 0.0
        %v1674 = vmax.f32 %v1563, 0.0
        %v1675 = vmax.f32 %v1412, 0.0
        %v1676 = vmax.f32 %v1414, 0.0
        %v1677 = vmax.f32 %v1565, 0.0
        %v1678 = vmax.f32 %v1567, 0.0
        %v1679 = vmax.f32 %v1418, 0.0
        %v1680 = vmax.f32 %v1420, 0.0
        %v1681 = vmax.f32 %v1571, 0.0
        %v1682 = vmax.f32 %v1573, 0.0
        %v1683 = vmax.f32 %v1422, 0.0
        %v1684 = vmax.f32 %v1424, 0.0
        %v1685 = vmax.f32 %v1575, 0.0
        %v1686 = vmax.f32 %v1577, 0.0
        %v1687 = vmax.f32 %v1428, 0.0
        %v1688 = vmax.f32 %v1430, 0.0
        %v1689 = vmax.f32 %v1581, 0.0
        %v1690 = vmax.f32 %v1583, 0.0
        %v1691 = vmax.f32 %v1432, 0.0
        %v1692 = vmax.f32 %v1434, 0.0
        %v1693 = vmax.f32 %v1585, 0.0
        %v1694 = vmax.f32 %v1587, 0.0
        %v1695 = vmax.f32 %v1438, 0.0
        %v1696 = vmax.f32 %v1440, 0.0
        %v1697 = vmax.f32 %v1591, 0.0
        %v1698 = vmax.f32 %v1593, 0.0
        %v1699 = vmax.f32 %v1442, 0.0
        %v1700 = vmax.f32 %v1444, 0.0
        %v1701 = vmax.f32 %v1595, 0.0
        %v1702 = vmax.f32 %v1597, 0.0
        %v1703 = vmax.f32 %v1448, 0.0
        %v1704 = vmax.f32 %v1450, 0.0
        %v1705 = vmax.f32 %v1601, 0.0
        %v1706 = vmax.f32 %v1603, 0.0
        %v1707 = vmax.f32 %v1452, 0.0
        %v1708 = vmax.f32 %v1454, 0.0
        %v1709 = vmax.f32 %v1605, 0.0
        %v1710 = vmax.f32 %v1607, 0.0
        %v1711 = vmax.f32 %v1458, 0.0
        %v1712 = vmax.f32 %v1460, 0.0
        %v1713 = vmax.f32 %v1611, 0.0
        %v1714 = vmax.f32 %v1613, 0.0
        %v1715 = vmax.f32 %v1462, 0.0
        %v1716 = vmax.f32 %v1464, 0.0
        %v1717 = vmax.f32 %v1615, 0.0
        %v1718 = vmax.f32 %v1617, 0.0
        %v1719 = vmax.f32 %v1468, 0.0
        %v1720 = vmax.f32 %v1470, 0.0
        %v1721 = vmax.f32 %v1621, 0.0
        %v1722 = vmax.f32 %v1623, 0.0
        %v1723 = vmax.f32 %v1472, 0.0
        %v1724 = vmax.f32 %v1474, 0.0
        %v1725 = vmax.f32 %v1625, 0.0
        %v1726 = vmax.f32 %v1627, 0.0
        %v1727 = vmax.f32 %v1478, 0.0
        %v1728 = vmax.f32 %v1480, 0.0
        %v1729 = vmax.f32 %v1631, 0.0
        %v1730 = vmax.f32 %v1633, 0.0
        %v1731 = vmax.f32 %v1482, 0.0
        %v1732 = vmax.f32 %v1484, 0.0
        %v1733 = vmax.f32 %v1635, 0.0
        %v1734 = vmax.f32 %v1637, 0.0
        %v1735 = vld [vmem:[%s5] sm:$0xf]
        %v1736 = vpack.c.bf16 %v1643, %v1639
        %v1737 = vpack.c.bf16 %v1644, %v1640
        %v1738 = vpack.c.bf16 %v1645, %v1641
        %v1739 = vpack.c.bf16 %v1646, %v1642
        %v1740 = vpack.c.bf16 %v1651, %v1647
        %v1741 = vpack.c.bf16 %v1652, %v1648
        %v1742 = vpack.c.bf16 %v1653, %v1649
        %v1743 = vpack.c.bf16 %v1654, %v1650
        %v1744 = vpack.c.bf16 %v1659, %v1655
        %v1745 = vpack.c.bf16 %v1660, %v1656
        %v1746 = vpack.c.bf16 %v1661, %v1657
        %v1747 = vpack.c.bf16 %v1662, %v1658
        %v1748 = vpack.c.bf16 %v1667, %v1663
        %v1749 = vpack.c.bf16 %v1668, %v1664
        %v1750 = vpack.c.bf16 %v1669, %v1665
        %v1751 = vpack.c.bf16 %v1670, %v1666
        %v1752 = vpack.c.bf16 %v1675, %v1671
        %v1753 = vpack.c.bf16 %v1676, %v1672
        %v1754 = vpack.c.bf16 %v1677, %v1673
        %v1755 = vpack.c.bf16 %v1678, %v1674
        %v1756 = vpack.c.bf16 %v1683, %v1679
        %v1757 = vpack.c.bf16 %v1684, %v1680
        %v1758 = vpack.c.bf16 %v1685, %v1681
        %v1759 = vpack.c.bf16 %v1686, %v1682
        %v1760 = vpack.c.bf16 %v1691, %v1687
        %v1761 = vpack.c.bf16 %v1692, %v1688
        %v1762 = vpack.c.bf16 %v1693, %v1689
        %v1763 = vpack.c.bf16 %v1694, %v1690
        %v1764 = vpack.c.bf16 %v1699, %v1695
        %v1765 = vpack.c.bf16 %v1700, %v1696
        %v1766 = vpack.c.bf16 %v1701, %v1697
        %v1767 = vpack.c.bf16 %v1702, %v1698
        %v1768 = vpack.c.bf16 %v1707, %v1703
        %v1769 = vpack.c.bf16 %v1708, %v1704
        %v1770 = vpack.c.bf16 %v1709, %v1705
        %v1771 = vpack.c.bf16 %v1710, %v1706
        %v1772 = vpack.c.bf16 %v1715, %v1711
        %v1773 = vpack.c.bf16 %v1716, %v1712
        %v1774 = vpack.c.bf16 %v1717, %v1713
        %v1775 = vpack.c.bf16 %v1718, %v1714
        %v1776 = vpack.c.bf16 %v1723, %v1719
        %v1777 = vpack.c.bf16 %v1724, %v1720
        %v1778 = vpack.c.bf16 %v1725, %v1721
        %v1779 = vpack.c.bf16 %v1726, %v1722
        %v1780 = vpack.c.bf16 %v1731, %v1727
        %v1781 = vpack.c.bf16 %v1732, %v1728
        %v1782 = vpack.c.bf16 %v1733, %v1729
        %v1783 = vpack.c.bf16 %v1734, %v1730
        %v1784 = vld [vmem:[%s6] sm:$0xf]
        %1786 = vset.pattern.permute.xlu0 0
        %1787 = vperm.xlu0 %1786, %v1784
        %v1788 = vpop.permute.xlu0 %1787
        %v1792 = vunpack.c.l.s4 1983009808
        %v1793 = vunpack.c.0.s8 %v1792
        %v1794 = vlaneseq
        %v1795 = vshrl.u32 %v1794, 7
        %v1796 = vsub.s32 %v1793, %v1795
        %v1797 = vrot.slane %v1735, %v1796
        %v1798 = vcombine.high %v1797, %v1797
        %v1801 = vsel %vm1296, %v1798, 0
        %1803 = vmatprep.subr.bf16.mxu0 %v1765
        %1804 = vmatpush1.bf16.msra.mxu0 %v1764
        %1805 = vmatprep.subr.bf16.mxu0 %v1761
        %1806 = vmatpush1.bf16.msra.mxu0 %v1760
        %1807 = vmatprep.subr.bf16.mxu0 %v1757
        %1808 = vmatpush1.bf16.msra.mxu0 %v1756
        %1809 = vmatprep.subr.bf16.mxu0 %v1753
        %1810 = vmatpush1.bf16.msra.mxu0 %v1752
        %1811 = vmatprep.subr.bf16.mxu0 %v1749
        %1812 = vmatpush1.bf16.msra.mxu0 %v1748
        %1813 = vmatprep.subr.bf16.mxu0 %v1745
        %1814 = vmatpush1.bf16.msra.mxu0 %v1744
        %1815 = vmatprep.subr.bf16.mxu0 %v1741
        %1816 = vmatpush1.bf16.msra.mxu0 %v1740
        %1817 = vmatprep.subr.bf16.mxu0 %v1737
        %1818 = vmatpush1.bf16.msra.mxu0 %v1736
        %1819 = vmatprep.subr.bf16.mxu0 0
        %1820 = vmatpush2.bf16.msra.mxu0 0
        %1821 = vmatprep.subr.bf16.mxu0 0
        %1822 = vmatpush2.bf16.msra.mxu0 0
        %1823 = vmatprep.subr.bf16.mxu0 0
        %1824 = vmatpush2.bf16.msra.mxu0 0
        %1825 = vmatprep.subr.bf16.mxu0 0
        %1826 = vmatpush2.bf16.msra.mxu0 0
        %1827 = vmatprep.subr.bf16.mxu0 %v1781
        %1828 = vmatpush2.bf16.msra.mxu0 %v1780
        %1829 = vmatprep.subr.bf16.mxu0 %v1777
        %1830 = vmatpush2.bf16.msra.mxu0 %v1776
        %1831 = vmatprep.subr.bf16.mxu0 %v1773
        %1832 = vmatpush2.bf16.msra.mxu0 %v1772
        %1833 = vmatprep.subr.bf16.mxu0 %v1769
        %1834 = vmatpush2.bf16.msra.mxu0 %v1768
        %1835 = vmatprep.mubr.bf16.mxu0 %v1801
        %1836 = vmatmul.mubr.bf16.gmra.mxu0 %v1797
        %v1837 = vpop.f32.mrf.mxu0
        %v1838 = vadd.f32 %v1788, %v1837
        %v1839 = vpop.f32.mrf.mxu0
        %v1840 = vadd.f32 %v1788, %v1839
        %v1841 = vpop.f32.mrf.mxu0
        %v1842 = vpop.f32.mrf.mxu0
        %1843 = vdwg.mxu0
        %1844 = vmatprep.subr.bf16.mxu0 %v1767
        %1845 = vmatpush1.bf16.msra.mxu0 %v1766
        %1846 = vmatprep.subr.bf16.mxu0 %v1763
        %1847 = vmatpush1.bf16.msra.mxu0 %v1762
        %1848 = vmatprep.subr.bf16.mxu0 %v1759
        %1849 = vmatpush1.bf16.msra.mxu0 %v1758
        %1850 = vmatprep.subr.bf16.mxu0 %v1755
        %1851 = vmatpush1.bf16.msra.mxu0 %v1754
        %1852 = vmatprep.subr.bf16.mxu0 %v1751
        %1853 = vmatpush1.bf16.msra.mxu0 %v1750
        %1854 = vmatprep.subr.bf16.mxu0 %v1747
        %1855 = vmatpush1.bf16.msra.mxu0 %v1746
        %1856 = vmatprep.subr.bf16.mxu0 %v1743
        %1857 = vmatpush1.bf16.msra.mxu0 %v1742
        %1858 = vmatprep.subr.bf16.mxu0 %v1739
        %1859 = vmatpush1.bf16.msra.mxu0 %v1738
        %1860 = vmatprep.subr.bf16.mxu0 0
        %1861 = vmatpush2.bf16.msra.mxu0 0
        %1862 = vmatprep.subr.bf16.mxu0 0
        %1863 = vmatpush2.bf16.msra.mxu0 0
        %1864 = vmatprep.subr.bf16.mxu0 0
        %1865 = vmatpush2.bf16.msra.mxu0 0
        %1866 = vmatprep.subr.bf16.mxu0 0
        %1867 = vmatpush2.bf16.msra.mxu0 0
        %1868 = vmatprep.subr.bf16.mxu0 %v1783
        %1869 = vmatpush2.bf16.msra.mxu0 %v1782
        %1870 = vmatprep.subr.bf16.mxu0 %v1779
        %1871 = vmatpush2.bf16.msra.mxu0 %v1778
        %1872 = vmatprep.subr.bf16.mxu0 %v1775
        %1873 = vmatpush2.bf16.msra.mxu0 %v1774
        %1874 = vmatprep.subr.bf16.mxu0 %v1771
        %1875 = vmatpush2.bf16.msra.mxu0 %v1770
        %1876 = vmatprep.mubr.bf16.mxu0 %v1801
        %1877 = vmatmul.mubr.bf16.gmra.mxu0 %v1797
        %v1878 = vpop.f32.mrf.mxu0
        %v1879 = vadd.f32 %v1788, %v1878
        %v1880 = vpop.f32.mrf.mxu0
        %v1881 = vadd.f32 %v1788, %v1880
        %v1882 = vpop.f32.mrf.mxu0
        %v1883 = vpop.f32.mrf.mxu0
        %1884 = vdwg.mxu0
        %v1889 = vcombine.low %v1838, %v1840
        %v1890 = vcombine.low %v1879, %v1881
        %1893 = vst [vmem:[%s272] sm:$0xff] %v1889
        %1894 = vst [vmem:[%s272 + $0x8] sm:$0xff] %v1890
        %s1895 = sand.u32 %s181, 1
        %s1896 = scalar_lea.sflag [#allocation3], %s1895
        %s1897 = sand.u32 %s181, 1
        %s1898 = smul.addr %s1897, 16
        %s1899 = scalar_lea.vmem [#allocation2], %s1898
        // Predicated region
        $region49: #{shadow_v4_mlp.1} parent=47 // pred_check
          %p1900 = pneg %p191
        $region50: #{shadow_v4_mlp.1} parent=47 // pred_check_branch
          %1902 = sbr.rel (%p1900) target = $region52
        $region51: #{shadow_v4_mlp.1} parent=47 // pred_region
          %s1903 = smul.u32 4, %s21
          %s1905 = ssub.s32 256, 256
          %1906 = vsyncadd %s1896, %s1905
          %s1907 = smul.addr %s1903, 64
          %s1908 = scalar_lea.hbm %s7, %s1907
          %s1910 = sshll.u32 %s1899, 4
          %s1911 = int_to_ptr.vmem [resolvable:$true] %s1910
          %1913 = dma.vmem_to_hbm [thread:$0]  %s1911, 256, %s1908, %s1896
        $region52: #{shadow_v4_mlp.1} parent=47 // pred_fallthru
          _
      $region48: #{shadow_v4_mlp.1} parent=5 // pred_fallthru
        _
      %p1914 = scmp.le.s32.totalorder 2, %s16
      // Predicated region
      $region53: #{shadow_v4_mlp.1} parent=5 // pred_check
        %p1915 = pneg %p1914
      $region54: #{shadow_v4_mlp.1} parent=5 // pred_check_branch
        %1917 = sbr.rel (%p1915) target = $region56
      $region55: #{shadow_v4_mlp.1} parent=5 // pred_region
        %s1918 = ssub.s32 %s16, 2
        // Predicated region
        $region57: #{shadow_v4_mlp.1} parent=55 // pred_check
          %p1919 = pneg %p197
        $region58: #{shadow_v4_mlp.1} parent=55 // pred_check_branch
          %1921 = sbr.rel (%p1919) target = $region60
        $region59: #{shadow_v4_mlp.1} parent=55 // pred_region
          %s1922 = sand.u32 %s182, 1
          %s1923 = scalar_lea.sflag [#allocation3], %s1922
          %s1924 = sand.u32 %s182, 1
          %s1925 = smul.addr %s1924, 16
          %s1926 = scalar_lea.vmem [#allocation2], %s1925
          %1927 = dma.done %s1923, 256
        $region60: #{shadow_v4_mlp.1} parent=55 // pred_fallthru
          _
      $region56: #{shadow_v4_mlp.1} parent=5 // pred_fallthru
        _
    $region6: #{shadow_v4_mlp.1} parent=1 // loop_footer
      %s20 = sadd.s32 1, %s16
    $region7: #{shadow_v4_mlp.1} parent=1 // loop_footer_branch
      %15 = sbr.rel target = $region3
    $region8: #{shadow_v4_mlp.1} parent=1 // loop_exit
      _
    %1928 = vsyncpa [#allocation3], 1
    %s1929 = scalar_lea.sflag [#allocation3], 1
    %1930 = vsyncpa %s1929, 1

</llo_original>
